<compile_context>
chip_gen: v6e
topology: v6e:2x2x1
jax: 0.10.0
libtpu: 0.0.40
codegen_flags: <defaults>
</compile_context>

<pallas_src>
import jax
import jax.numpy as jnp
from jax.experimental import pallas as pl
from jax.experimental.pallas import tpu as pltpu


# ----------------------------- shared math --------------------------------- #

def _elu(x):
    # nn.ELU(alpha=1.0). Clamp the exp argument so the unselected branch never
    # overflows to inf (expm1 avoided: lowering support not guaranteed on all
    # TPU generations).
    return jnp.where(x > 0, x, jnp.exp(jnp.minimum(x, 0.0)) - 1.0)


def _fused_step(emb, act, h, w1s, w1a, b1, w_i, w_h, b_i3, b_h3):
    """One Linear->ELU->GRUCell step on plain arrays (f32 activations).

    Weight layout: (in_features, out_features); gate weights fused as [r|z|n].
    b_i3 = [b_ir + b_hr, b_iz + b_hz, b_in]; b_h3 = [0, 0, b_hn].
    """
    d = w_h.shape[0]
    cdt = w_i.dtype  # compute dtype fed to the MXU (bf16); accumulation is f32

    # Linear + ELU (split weight: no HBM concat of [emb, act] needed).
    pre = (jnp.dot(emb.astype(cdt), w1s, preferred_element_type=jnp.float32)
           + jnp.dot(act.astype(cdt), w1a, preferred_element_type=jnp.float32)
           + b1)
    a = _elu(pre)                                             # (B, H), f32

    # Fused GRU gates: 2 matmuls instead of 6.
    i_all = jnp.dot(a.astype(cdt), w_i,
                    preferred_element_type=jnp.float32) + b_i3   # (B, 3D)
    h_all = jnp.dot(h.astype(cdt), w_h,
                    preferred_element_type=jnp.float32) + b_h3   # (B, 3D)

    # r and z share one add + one sigmoid over the (B, 2D) slab.
    rz = jax.nn.sigmoid(i_all[:, :2 * d] + h_all[:, :2 * d])
    r = rz[:, :d]
    z = rz[:, d:]
    n = jnp.tanh(i_all[:, 2 * d:] + r * h_all[:, 2 * d:])
    # (1 - z) * n + z * h  ==  n + z * (h - n)   (one fewer multiply)
    return n + z * (h - n)


# ----------------------------- Pallas kernels ------------------------------ #

def recurrent_step_kernel(emb_ref, act_ref, h_ref,
                          w1s_ref, w1a_ref, b1_ref,
                          wi_ref, wh_ref, bi_ref, bh_ref,
                          out_ref):
    h_new = _fused_step(emb_ref[...], act_ref[...], h_ref[...],
                        w1s_ref[...], w1a_ref[...], b1_ref[...],
                        wi_ref[...], wh_ref[...], bi_ref[...], bh_ref[...])
    out_ref[...] = h_new.astype(out_ref.dtype)


def make_rollout_kernel(time_chunk):
    """Rollout kernel processing `time_chunk` GRU steps per grid iteration."""

    def kernel(emb_ref, act_ref, h0_ref,
               w1s_ref, w1a_ref, b1_ref,
               wi_ref, wh_ref, bi_ref, bh_ref,
               out_ref, h_scratch):
        t = pl.program_id(0)

        @pl.when(t == 0)
        def _():
            h_scratch[...] = h0_ref[...]

        # Hoist weight/bias loads out of the unrolled time loop.
        w1s, w1a, b1 = w1s_ref[...], w1a_ref[...], b1_ref[...]
        w_i, w_h = wi_ref[...], wh_ref[...]
        b_i3, b_h3 = bi_ref[...], bh_ref[...]

        h = h_scratch[...]
        for i in range(time_chunk):          # static unroll (time_chunk <= 8)
            h = _fused_step(emb_ref[i], act_ref[i], h,
                            w1s, w1a, b1, w_i, w_h, b_i3, b_h3)
        h_scratch[...] = h

        @pl.when(t == pl.num_programs(0) - 1)
        def _():
            out_ref[...] = h.astype(out_ref.dtype)

    return kernel


# ------------------------------ JAX wrappers -------------------------------- #

def init_params(key, action_size, stochastic_size, deterministic_size,
                hidden_size, param_dtype=jnp.bfloat16):
    """PyTorch-style uniform(-1/sqrt(fan_in), 1/sqrt(fan_in)) init, fused layout."""
    S, A, D, H = stochastic_size, action_size, deterministic_size, hidden_size
    in_dim = S + A
    ks = jax.random.split(key, 14)

    def u(k, shape, fan_in):
        lim = 1.0 / jnp.sqrt(jnp.float32(fan_in))
        return jax.random.uniform(k, shape, jnp.float32, -lim, lim)

    w1 = u(ks[0], (in_dim, H), in_dim)
    b1 = u(ks[1], (1, H), in_dim)

    # Gate weights fused along the output dimension: [r | z | n].
    w_i = jnp.concatenate([u(ks[2], (H, D), D), u(ks[3], (H, D), D),
                           u(ks[4], (H, D), D)], axis=1)            # (H, 3D)
    w_h = jnp.concatenate([u(ks[5], (D, D), D), u(ks[6], (D, D), D),
                           u(ks[7], (D, D), D)], axis=1)            # (D, 3D)

    b_ir, b_iz, b_in = u(ks[8], (1, D), D), u(ks[9], (1, D), D), u(ks[10], (1, D), D)
    b_hr, b_hz, b_hn = u(ks[11], (1, D), D), u(ks[12], (1, D), D), u(ks[13], (1, D), D)
    b_i3 = jnp.concatenate([b_ir + b_hr, b_iz + b_hz, b_in], axis=1)       # (1, 3D)
    b_h3 = jnp.concatenate([jnp.zeros((1, 2 * D), jnp.float32), b_hn], axis=1)

    return dict(
        w1_s=w1[:S].astype(param_dtype),       # (S, H)
        w1_a=w1[S:].astype(param_dtype),       # (A, H)
        b1=b1,                                 # (1, H)  f32
        w_i=w_i.astype(param_dtype),           # (H, 3D)
        w_h=w_h.astype(param_dtype),           # (D, 3D)
        b_i3=b_i3,                             # (1, 3D) f32
        b_h3=b_h3,                             # (1, 3D) f32
    )


def _step_cost(B, S, A, H, D, inputs, T=1):
    flops = 2 * T * B * (S * H + A * H + H * 3 * D + D * 3 * D)
    transcendentals = T * B * (H + 3 * D)
    bytes_accessed = sum(int(a.size) * a.dtype.itemsize for a in inputs) + B * D * 4
    return pl.CostEstimate(flops=flops, transcendentals=transcendentals,
                           bytes_accessed=bytes_accessed)


def recurrent_model_forward(embedded_state, action, deterministic, params,
                            *, block_b=256, donate_h=True):
    """Single-step forward (matches the PyTorch module's forward)."""
    B, S = embedded_state.shape
    A = action.shape[1]
    D = deterministic.shape[1]
    H = params["w1_s"].shape[1]

    emb = embedded_state.astype(jnp.float32)
    act = action.astype(jnp.float32)
    h = deterministic.astype(jnp.float32)

    # Batch tiling: full batch if small, otherwise 256-row (sublane-aligned) tiles.
    bb = B if B <= block_b else block_b
    grid = (pl.cdiv(B, bb),)

    inputs = (emb, act, h,
              params["w1_s"], params["w1_a"], params["b1"],
              params["w_i"], params["w_h"], params["b_i3"], params["b_h3"])

    in_specs = [
        pl.BlockSpec((bb, S), lambda i: (i, 0)),
        pl.BlockSpec((bb, A), lambda i: (i, 0)),
        pl.BlockSpec((bb, D), lambda i: (i, 0)),
    ] + [pl.BlockSpec(a.shape, lambda i: (0, 0)) for a in inputs[3:]]  # resident weights

    return pl.pallas_call(
        recurrent_step_kernel,
        out_shape=jax.ShapeDtypeStruct((B, D), jnp.float32),
        grid=grid,
        in_specs=in_specs,
        out_specs=pl.BlockSpec((bb, D), lambda i: (i, 0)),
        # Alias h -> h' (no extra HBM buffer when used recurrently).
        input_output_aliases={2: 0} if donate_h else {},
        compiler_params=pltpu.CompilerParams(
            # Batch axis is independent -> shards across v7x's 2 TensorCores.
            dimension_semantics=("parallel",)),
        cost_estimate=_step_cost(B, S, A, H, D, inputs),
    )(*inputs)


def _pick_time_chunk(T, max_chunk=8):
    """Largest divisor of T not exceeding max_chunk (static unroll factor)."""
    tc = 1
    for c in range(1, min(T, max_chunk) + 1):
        if T % c == 0:
            tc = c
    return tc


def recurrent_model_rollout(emb_seq, act_seq, h0, params, *, max_chunk=8):
    """Time loop internalized: one pallas_call for T GRU steps.

    The grid iterates over time CHUNKS; each grid step runs a fully-unrolled
    static loop over `tc` timesteps (amortizing per-grid-step overhead), with
    weights VMEM-resident (constant index_maps), per-chunk inputs streamed by
    the BlockSpec pipeline, and h carried in VMEM scratch.
    Returns the final hidden state (B, D).
    """
    T, B, S = emb_seq.shape
    A = act_seq.shape[2]
    D = h0.shape[1]
    H = params["w1_s"].shape[1]

    emb_seq = emb_seq.astype(jnp.float32)
    act_seq = act_seq.astype(jnp.float32)
    h0 = h0.astype(jnp.float32)

    tc = _pick_time_chunk(T, max_chunk)
    grid = (T // tc,)

    inputs = (emb_seq, act_seq, h0,
              params["w1_s"], params["w1_a"], params["b1"],
              params["w_i"], params["w_h"], params["b_i3"], params["b_h3"])

    in_specs = [
        pl.BlockSpec((tc, B, S), lambda t: (t, 0, 0)),     # tc steps streamed per grid iter
        pl.BlockSpec((tc, B, A), lambda t: (t, 0, 0)),
        pl.BlockSpec((B, D), lambda t: (0, 0)),            # h0 (read once)
    ] + [pl.BlockSpec(a.shape, lambda t: (0, 0)) for a in inputs[3:]]  # resident weights

    return pl.pallas_call(
        make_rollout_kernel(tc),
        out_shape=jax.ShapeDtypeStruct((B, D), jnp.float32),
        grid=grid,
        in_specs=in_specs,
        out_specs=pl.BlockSpec((B, D), lambda t: (0, 0)),
        scratch_shapes=[pltpu.VMEM((B, D), jnp.float32)],
        compiler_params=pltpu.CompilerParams(
            dimension_semantics=("arbitrary",)),           # sequential recurrence
        cost_estimate=_step_cost(B, S, A, H, D, inputs, T=T),
    )(*inputs)


def recurrent_model_reference(embedded_state, action, deterministic, params):
    """Pure-JAX reference using identical math/dtypes."""
    return _fused_step(embedded_state.astype(jnp.float32),
                       action.astype(jnp.float32),
                       deterministic.astype(jnp.float32),
                       params["w1_s"], params["w1_a"], params["b1"],
                       params["w_i"], params["w_h"],
                       params["b_i3"], params["b_h3"])


# --------------------------------- main ------------------------------------ #

if __name__ == "__main__":
    batch_size = 2
    action_size = 8
    stochastic_size = 32
    deterministic_size = 32
    hidden_size = 32
    seq_len = 8  # rollout demo length

    key = jax.random.PRNGKey(0)
    k_emb, k_act, k_det, k_par, k_se, k_sa = jax.random.split(key, 6)

    embedded_state = jax.random.normal(k_emb, (batch_size, stochastic_size), jnp.float32)
    action = jax.random.normal(k_act, (batch_size, action_size), jnp.float32)
    deterministic = jax.random.normal(k_det, (batch_size, deterministic_size), jnp.float32)

    params = init_params(k_par, action_size, stochastic_size,
                         deterministic_size, hidden_size)

    # Pure-JAX references (computed before the aliased pallas call touches h).
    ref_step = recurrent_model_reference(embedded_state, action, deterministic, params)

    emb_seq = jax.random.normal(k_se, (seq_len, batch_size, stochastic_size), jnp.float32)
    act_seq = jax.random.normal(k_sa, (seq_len, batch_size, action_size), jnp.float32)
    h_ref = deterministic
    for t in range(seq_len):
        h_ref = recurrent_model_reference(emb_seq[t], act_seq[t], h_ref, params)

    # In-kernel time loop (weights VMEM-resident, h carried in scratch).
    out_roll = jax.block_until_ready(
        recurrent_model_rollout(emb_seq, act_seq, deterministic, params))

    # Single step (module's forward); run last: it aliases `deterministic` into its output.
    out_step = jax.block_until_ready(
        recurrent_model_forward(embedded_state, action, deterministic, params))

    assert out_step.shape == (batch_size, deterministic_size)
    assert out_roll.shape == (batch_size, deterministic_size)
    assert bool(jnp.all(jnp.isfinite(out_step)))
    assert bool(jnp.all(jnp.isfinite(out_roll)))
    assert jnp.allclose(out_step, ref_step, atol=5e-3, rtol=5e-3)
    assert jnp.allclose(out_roll, h_ref, atol=5e-3, rtol=5e-3)
    print("KERNEL_OK")
</pallas_src>

<mosaic_0001>
module attributes {stable_mosaic.version = 11 : i64} {
  func.func @kernel(%arg0: i32, %arg1: memref<8x2x32xf32, #tpu.memory_space<vmem>>, %arg2: memref<8x2x8xf32, #tpu.memory_space<vmem>>, %arg3: memref<2x32xf32, #tpu.memory_space<vmem>>, %arg4: memref<32x32xbf16, #tpu.memory_space<vmem>>, %arg5: memref<8x32xbf16, #tpu.memory_space<vmem>>, %arg6: memref<1x32xf32, #tpu.memory_space<vmem>>, %arg7: memref<32x96xbf16, #tpu.memory_space<vmem>>, %arg8: memref<32x96xbf16, #tpu.memory_space<vmem>>, %arg9: memref<1x96xf32, #tpu.memory_space<vmem>>, %arg10: memref<1x96xf32, #tpu.memory_space<vmem>>, %arg11: memref<2x32xf32, #tpu.memory_space<vmem>>, %arg12: memref<2x32xf32, #tpu.memory_space<vmem>>) attributes {dimension_semantics = [#tpu.dimension_semantics<arbitrary>], iteration_bounds = array<i64: 1>, scalar_prefetch = 0 : i64, scratch_operands = 1 : i64, tpu.core_type = #tpu.core_type<tc>, window_params = [{transform_indices = @transform_0, window_bounds = array<i64: 8, 2, 32>}, {transform_indices = @transform_1, window_bounds = array<i64: 8, 2, 8>}, {pipeline_mode = #tpu.pipeline_mode<synchronous>, transform_indices = @transform_2, window_bounds = array<i64: 2, 32>}, {pipeline_mode = #tpu.pipeline_mode<synchronous>, transform_indices = @transform_3, window_bounds = array<i64: 32, 32>}, {pipeline_mode = #tpu.pipeline_mode<synchronous>, transform_indices = @transform_4, window_bounds = array<i64: 8, 32>}, {pipeline_mode = #tpu.pipeline_mode<synchronous>, transform_indices = @transform_5, window_bounds = array<i64: 1, 32>}, {pipeline_mode = #tpu.pipeline_mode<synchronous>, transform_indices = @transform_6, window_bounds = array<i64: 32, 96>}, {pipeline_mode = #tpu.pipeline_mode<synchronous>, transform_indices = @transform_7, window_bounds = array<i64: 32, 96>}, {pipeline_mode = #tpu.pipeline_mode<synchronous>, transform_indices = @transform_8, window_bounds = array<i64: 1, 96>}, {pipeline_mode = #tpu.pipeline_mode<synchronous>, transform_indices = @transform_9, window_bounds = array<i64: 1, 96>}, {pipeline_mode = #tpu.pipeline_mode<synchronous>, transform_indices = @transform_10, window_bounds = array<i64: 2, 32>}]} {
    %c0_i32 = arith.constant 0 : i32
    %0 = arith.cmpi eq, %arg0, %c0_i32 : i32
    %1 = arith.extui %0 : i1 to i32
    %c0_i32_0 = arith.constant 0 : i32
    %2 = arith.cmpi ne, %1, %c0_i32_0 : i32
    scf.if %2 {
      %c0_124 = arith.constant 0 : index
      %c0_125 = arith.constant 0 : index
      %375 = vector.load %arg3[%c0_124, %c0_125] : memref<2x32xf32, #tpu.memory_space<vmem>>, vector<2x32xf32>
      %c0_126 = arith.constant 0 : index
      %c0_127 = arith.constant 0 : index
      %376 = vector.load %arg12[%c0_126, %c0_127] : memref<2x32xf32, #tpu.memory_space<vmem>>, vector<2x32xf32>
      tpu.vector_store %arg12[%c0_126, %c0_127], %375 {strides = array<i32>} : memref<2x32xf32, #tpu.memory_space<vmem>>, vector<2x32xf32>,
    } else {
    }
    %c0 = arith.constant 0 : index
    %c0_1 = arith.constant 0 : index
    %3 = vector.load %arg4[%c0, %c0_1] : memref<32x32xbf16, #tpu.memory_space<vmem>>, vector<32x32xbf16>
    %c0_2 = arith.constant 0 : index
    %c0_3 = arith.constant 0 : index
    %4 = vector.load %arg5[%c0_2, %c0_3] : memref<8x32xbf16, #tpu.memory_space<vmem>>, vector<8x32xbf16>
    %c0_4 = arith.constant 0 : index
    %c0_5 = arith.constant 0 : index
    %5 = vector.load %arg6[%c0_4, %c0_5] : memref<1x32xf32, #tpu.memory_space<vmem>>, vector<1x32xf32>
    %c0_6 = arith.constant 0 : index
    %c0_7 = arith.constant 0 : index
    %6 = vector.load %arg7[%c0_6, %c0_7] : memref<32x96xbf16, #tpu.memory_space<vmem>>, vector<32x96xbf16>
    %c0_8 = arith.constant 0 : index
    %c0_9 = arith.constant 0 : index
    %7 = vector.load %arg8[%c0_8, %c0_9] : memref<32x96xbf16, #tpu.memory_space<vmem>>, vector<32x96xbf16>
    %c0_10 = arith.constant 0 : index
    %c0_11 = arith.constant 0 : index
    %8 = vector.load %arg9[%c0_10, %c0_11] : memref<1x96xf32, #tpu.memory_space<vmem>>, vector<1x96xf32>
    %c0_12 = arith.constant 0 : index
    %c0_13 = arith.constant 0 : index
    %9 = vector.load %arg10[%c0_12, %c0_13] : memref<1x96xf32, #tpu.memory_space<vmem>>, vector<1x96xf32>
    %c0_14 = arith.constant 0 : index
    %c0_15 = arith.constant 0 : index
    %10 = vector.load %arg12[%c0_14, %c0_15] : memref<2x32xf32, #tpu.memory_space<vmem>>, vector<2x32xf32>
    %c0_16 = arith.constant 0 : index
    %c0_17 = arith.constant 0 : index
    %c0_18 = arith.constant 0 : index
    %11 = vector.load %arg1[%c0_16, %c0_17, %c0_18] : memref<8x2x32xf32, #tpu.memory_space<vmem>>, vector<1x2x32xf32>
    %12 = vector.shape_cast %11 : vector<1x2x32xf32> to vector<2x32xf32>
    %c0_19 = arith.constant 0 : index
    %c0_20 = arith.constant 0 : index
    %c0_21 = arith.constant 0 : index
    %13 = vector.load %arg2[%c0_19, %c0_20, %c0_21] : memref<8x2x8xf32, #tpu.memory_space<vmem>>, vector<1x2x8xf32>
    %14 = vector.shape_cast %13 : vector<1x2x8xf32> to vector<2x8xf32>
    %15 = arith.truncf %12 : vector<2x32xf32> to vector<2x32xbf16>
    %cst = arith.constant dense<0.000000e+00> : vector<2x32xf32>
    %16 = tpu.matmul %15, %3, %cst {dimension_numbers = #tpu.dot_dimension_numbers<[1], [0], [0], [1], [0, 0, 1, 1], [], []>} : vector<2x32xbf16>, vector<32x32xbf16>, vector<2x32xf32> -> vector<2x32xf32>
    %17 = arith.truncf %14 : vector<2x8xf32> to vector<2x8xbf16>
    %cst_22 = arith.constant dense<0.000000e+00> : vector<2x32xf32>
    %18 = tpu.matmul %17, %4, %cst_22 {dimension_numbers = #tpu.dot_dimension_numbers<[1], [0], [0], [1], [0, 0, 1, 1], [], []>} : vector<2x8xbf16>, vector<8x32xbf16>, vector<2x32xf32> -> vector<2x32xf32>
    %19 = arith.addf %16, %18 : vector<2x32xf32>
    %20 = vector.broadcast %5 : vector<1x32xf32> to vector<2x32xf32>
    %21 = arith.addf %19, %20 : vector<2x32xf32>
    %cst_23 = arith.constant 0.000000e+00 : f32
    %22 = vector.broadcast %cst_23 : f32 to vector<2x32xf32>
    %23 = arith.cmpf ogt, %21, %22 : vector<2x32xf32>
    %cst_24 = arith.constant 0.000000e+00 : f32
    %24 = vector.broadcast %cst_24 : f32 to vector<2x32xf32>
    %25 = arith.minimumf %21, %24 : vector<2x32xf32>
    %26 = math.exp %25 : vector<2x32xf32>
    %cst_25 = arith.constant 1.000000e+00 : f32
    %27 = vector.broadcast %cst_25 : f32 to vector<2x32xf32>
    %28 = arith.subf %26, %27 : vector<2x32xf32>
    %29 = arith.select %23, %21, %28 : vector<2x32xi1>, vector<2x32xf32>
    %30 = arith.truncf %29 : vector<2x32xf32> to vector<2x32xbf16>
    %cst_26 = arith.constant dense<0.000000e+00> : vector<2x96xf32>
    %31 = tpu.matmul %30, %6, %cst_26 {dimension_numbers = #tpu.dot_dimension_numbers<[1], [0], [0], [1], [0, 0, 1, 1], [], []>} : vector<2x32xbf16>, vector<32x96xbf16>, vector<2x96xf32> -> vector<2x96xf32>
    %32 = vector.broadcast %8 : vector<1x96xf32> to vector<2x96xf32>
    %33 = arith.addf %31, %32 : vector<2x96xf32>
    %34 = arith.truncf %10 : vector<2x32xf32> to vector<2x32xbf16>
    %cst_27 = arith.constant dense<0.000000e+00> : vector<2x96xf32>
    %35 = tpu.matmul %34, %7, %cst_27 {dimension_numbers = #tpu.dot_dimension_numbers<[1], [0], [0], [1], [0, 0, 1, 1], [], []>} : vector<2x32xbf16>, vector<32x96xbf16>, vector<2x96xf32> -> vector<2x96xf32>
    %36 = vector.broadcast %9 : vector<1x96xf32> to vector<2x96xf32>
    %37 = arith.addf %35, %36 : vector<2x96xf32>
    %38 = vector.extract_strided_slice %33 {offsets = [0, 0], sizes = [2, 64], strides = [1, 1]} : vector<2x96xf32> to vector<2x64xf32>
    %39 = vector.extract_strided_slice %37 {offsets = [0, 0], sizes = [2, 64], strides = [1, 1]} : vector<2x96xf32> to vector<2x64xf32>
    %40 = arith.addf %38, %39 : vector<2x64xf32>
    %41 = arith.negf %40 : vector<2x64xf32>
    %42 = math.exp %41 : vector<2x64xf32>
    %cst_28 = arith.constant 1.000000e+00 : f32
    %43 = vector.broadcast %cst_28 : f32 to vector<2x64xf32>
    %44 = arith.addf %43, %42 : vector<2x64xf32>
    %45 = arith.divf %43, %44 : vector<2x64xf32>
    %46 = vector.extract_strided_slice %45 {offsets = [0, 0], sizes = [2, 32], strides = [1, 1]} : vector<2x64xf32> to vector<2x32xf32>
    %47 = vector.extract_strided_slice %45 {offsets = [0, 32], sizes = [2, 32], strides = [1, 1]} : vector<2x64xf32> to vector<2x32xf32>
    %48 = vector.extract_strided_slice %33 {offsets = [0, 64], sizes = [2, 32], strides = [1, 1]} : vector<2x96xf32> to vector<2x32xf32>
    %49 = vector.extract_strided_slice %37 {offsets = [0, 64], sizes = [2, 32], strides = [1, 1]} : vector<2x96xf32> to vector<2x32xf32>
    %50 = arith.mulf %46, %49 : vector<2x32xf32>
    %51 = arith.addf %48, %50 : vector<2x32xf32>
    %52 = math.tanh %51 : vector<2x32xf32>
    %53 = arith.subf %10, %52 : vector<2x32xf32>
    %54 = arith.mulf %47, %53 : vector<2x32xf32>
    %55 = arith.addf %52, %54 : vector<2x32xf32>
    %c1 = arith.constant 1 : index
    %c0_29 = arith.constant 0 : index
    %c0_30 = arith.constant 0 : index
    %56 = vector.load %arg1[%c1, %c0_29, %c0_30] : memref<8x2x32xf32, #tpu.memory_space<vmem>>, vector<1x2x32xf32>
    %57 = vector.shape_cast %56 : vector<1x2x32xf32> to vector<2x32xf32>
    %c1_31 = arith.constant 1 : index
    %c0_32 = arith.constant 0 : index
    %c0_33 = arith.constant 0 : index
    %58 = vector.load %arg2[%c1_31, %c0_32, %c0_33] : memref<8x2x8xf32, #tpu.memory_space<vmem>>, vector<1x2x8xf32>
    %59 = vector.shape_cast %58 : vector<1x2x8xf32> to vector<2x8xf32>
    %60 = arith.truncf %57 : vector<2x32xf32> to vector<2x32xbf16>
    %cst_34 = arith.constant dense<0.000000e+00> : vector<2x32xf32>
    %61 = tpu.matmul %60, %3, %cst_34 {dimension_numbers = #tpu.dot_dimension_numbers<[1], [0], [0], [1], [0, 0, 1, 1], [], []>} : vector<2x32xbf16>, vector<32x32xbf16>, vector<2x32xf32> -> vector<2x32xf32>
    %62 = arith.truncf %59 : vector<2x8xf32> to vector<2x8xbf16>
    %cst_35 = arith.constant dense<0.000000e+00> : vector<2x32xf32>
    %63 = tpu.matmul %62, %4, %cst_35 {dimension_numbers = #tpu.dot_dimension_numbers<[1], [0], [0], [1], [0, 0, 1, 1], [], []>} : vector<2x8xbf16>, vector<8x32xbf16>, vector<2x32xf32> -> vector<2x32xf32>
    %64 = arith.addf %61, %63 : vector<2x32xf32>
    %65 = vector.broadcast %5 : vector<1x32xf32> to vector<2x32xf32>
    %66 = arith.addf %64, %65 : vector<2x32xf32>
    %cst_36 = arith.constant 0.000000e+00 : f32
    %67 = vector.broadcast %cst_36 : f32 to vector<2x32xf32>
    %68 = arith.cmpf ogt, %66, %67 : vector<2x32xf32>
    %cst_37 = arith.constant 0.000000e+00 : f32
    %69 = vector.broadcast %cst_37 : f32 to vector<2x32xf32>
    %70 = arith.minimumf %66, %69 : vector<2x32xf32>
    %71 = math.exp %70 : vector<2x32xf32>
    %cst_38 = arith.constant 1.000000e+00 : f32
    %72 = vector.broadcast %cst_38 : f32 to vector<2x32xf32>
    %73 = arith.subf %71, %72 : vector<2x32xf32>
    %74 = arith.select %68, %66, %73 : vector<2x32xi1>, vector<2x32xf32>
    %75 = arith.truncf %74 : vector<2x32xf32> to vector<2x32xbf16>
    %cst_39 = arith.constant dense<0.000000e+00> : vector<2x96xf32>
    %76 = tpu.matmul %75, %6, %cst_39 {dimension_numbers = #tpu.dot_dimension_numbers<[1], [0], [0], [1], [0, 0, 1, 1], [], []>} : vector<2x32xbf16>, vector<32x96xbf16>, vector<2x96xf32> -> vector<2x96xf32>
    %77 = vector.broadcast %8 : vector<1x96xf32> to vector<2x96xf32>
    %78 = arith.addf %76, %77 : vector<2x96xf32>
    %79 = arith.truncf %55 : vector<2x32xf32> to vector<2x32xbf16>
    %cst_40 = arith.constant dense<0.000000e+00> : vector<2x96xf32>
    %80 = tpu.matmul %79, %7, %cst_40 {dimension_numbers = #tpu.dot_dimension_numbers<[1], [0], [0], [1], [0, 0, 1, 1], [], []>} : vector<2x32xbf16>, vector<32x96xbf16>, vector<2x96xf32> -> vector<2x96xf32>
    %81 = vector.broadcast %9 : vector<1x96xf32> to vector<2x96xf32>
    %82 = arith.addf %80, %81 : vector<2x96xf32>
    %83 = vector.extract_strided_slice %78 {offsets = [0, 0], sizes = [2, 64], strides = [1, 1]} : vector<2x96xf32> to vector<2x64xf32>
    %84 = vector.extract_strided_slice %82 {offsets = [0, 0], sizes = [2, 64], strides = [1, 1]} : vector<2x96xf32> to vector<2x64xf32>
    %85 = arith.addf %83, %84 : vector<2x64xf32>
    %86 = arith.negf %85 : vector<2x64xf32>
    %87 = math.exp %86 : vector<2x64xf32>
    %cst_41 = arith.constant 1.000000e+00 : f32
    %88 = vector.broadcast %cst_41 : f32 to vector<2x64xf32>
    %89 = arith.addf %88, %87 : vector<2x64xf32>
    %90 = arith.divf %88, %89 : vector<2x64xf32>
    %91 = vector.extract_strided_slice %90 {offsets = [0, 0], sizes = [2, 32], strides = [1, 1]} : vector<2x64xf32> to vector<2x32xf32>
    %92 = vector.extract_strided_slice %90 {offsets = [0, 32], sizes = [2, 32], strides = [1, 1]} : vector<2x64xf32> to vector<2x32xf32>
    %93 = vector.extract_strided_slice %78 {offsets = [0, 64], sizes = [2, 32], strides = [1, 1]} : vector<2x96xf32> to vector<2x32xf32>
    %94 = vector.extract_strided_slice %82 {offsets = [0, 64], sizes = [2, 32], strides = [1, 1]} : vector<2x96xf32> to vector<2x32xf32>
    %95 = arith.mulf %91, %94 : vector<2x32xf32>
    %96 = arith.addf %93, %95 : vector<2x32xf32>
    %97 = math.tanh %96 : vector<2x32xf32>
    %98 = arith.subf %55, %97 : vector<2x32xf32>
    %99 = arith.mulf %92, %98 : vector<2x32xf32>
    %100 = arith.addf %97, %99 : vector<2x32xf32>
    %c2 = arith.constant 2 : index
    %c0_42 = arith.constant 0 : index
    %c0_43 = arith.constant 0 : index
    %101 = vector.load %arg1[%c2, %c0_42, %c0_43] : memref<8x2x32xf32, #tpu.memory_space<vmem>>, vector<1x2x32xf32>
    %102 = vector.shape_cast %101 : vector<1x2x32xf32> to vector<2x32xf32>
    %c2_44 = arith.constant 2 : index
    %c0_45 = arith.constant 0 : index
    %c0_46 = arith.constant 0 : index
    %103 = vector.load %arg2[%c2_44, %c0_45, %c0_46] : memref<8x2x8xf32, #tpu.memory_space<vmem>>, vector<1x2x8xf32>
    %104 = vector.shape_cast %103 : vector<1x2x8xf32> to vector<2x8xf32>
    %105 = arith.truncf %102 : vector<2x32xf32> to vector<2x32xbf16>
    %cst_47 = arith.constant dense<0.000000e+00> : vector<2x32xf32>
    %106 = tpu.matmul %105, %3, %cst_47 {dimension_numbers = #tpu.dot_dimension_numbers<[1], [0], [0], [1], [0, 0, 1, 1], [], []>} : vector<2x32xbf16>, vector<32x32xbf16>, vector<2x32xf32> -> vector<2x32xf32>
    %107 = arith.truncf %104 : vector<2x8xf32> to vector<2x8xbf16>
    %cst_48 = arith.constant dense<0.000000e+00> : vector<2x32xf32>
    %108 = tpu.matmul %107, %4, %cst_48 {dimension_numbers = #tpu.dot_dimension_numbers<[1], [0], [0], [1], [0, 0, 1, 1], [], []>} : vector<2x8xbf16>, vector<8x32xbf16>, vector<2x32xf32> -> vector<2x32xf32>
    %109 = arith.addf %106, %108 : vector<2x32xf32>
    %110 = vector.broadcast %5 : vector<1x32xf32> to vector<2x32xf32>
    %111 = arith.addf %109, %110 : vector<2x32xf32>
    %cst_49 = arith.constant 0.000000e+00 : f32
    %112 = vector.broadcast %cst_49 : f32 to vector<2x32xf32>
    %113 = arith.cmpf ogt, %111, %112 : vector<2x32xf32>
    %cst_50 = arith.constant 0.000000e+00 : f32
    %114 = vector.broadcast %cst_50 : f32 to vector<2x32xf32>
    %115 = arith.minimumf %111, %114 : vector<2x32xf32>
    %116 = math.exp %115 : vector<2x32xf32>
    %cst_51 = arith.constant 1.000000e+00 : f32
    %117 = vector.broadcast %cst_51 : f32 to vector<2x32xf32>
    %118 = arith.subf %116, %117 : vector<2x32xf32>
    %119 = arith.select %113, %111, %118 : vector<2x32xi1>, vector<2x32xf32>
    %120 = arith.truncf %119 : vector<2x32xf32> to vector<2x32xbf16>
    %cst_52 = arith.constant dense<0.000000e+00> : vector<2x96xf32>
    %121 = tpu.matmul %120, %6, %cst_52 {dimension_numbers = #tpu.dot_dimension_numbers<[1], [0], [0], [1], [0, 0, 1, 1], [], []>} : vector<2x32xbf16>, vector<32x96xbf16>, vector<2x96xf32> -> vector<2x96xf32>
    %122 = vector.broadcast %8 : vector<1x96xf32> to vector<2x96xf32>
    %123 = arith.addf %121, %122 : vector<2x96xf32>
    %124 = arith.truncf %100 : vector<2x32xf32> to vector<2x32xbf16>
    %cst_53 = arith.constant dense<0.000000e+00> : vector<2x96xf32>
    %125 = tpu.matmul %124, %7, %cst_53 {dimension_numbers = #tpu.dot_dimension_numbers<[1], [0], [0], [1], [0, 0, 1, 1], [], []>} : vector<2x32xbf16>, vector<32x96xbf16>, vector<2x96xf32> -> vector<2x96xf32>
    %126 = vector.broadcast %9 : vector<1x96xf32> to vector<2x96xf32>
    %127 = arith.addf %125, %126 : vector<2x96xf32>
    %128 = vector.extract_strided_slice %123 {offsets = [0, 0], sizes = [2, 64], strides = [1, 1]} : vector<2x96xf32> to vector<2x64xf32>
    %129 = vector.extract_strided_slice %127 {offsets = [0, 0], sizes = [2, 64], strides = [1, 1]} : vector<2x96xf32> to vector<2x64xf32>
    %130 = arith.addf %128, %129 : vector<2x64xf32>
    %131 = arith.negf %130 : vector<2x64xf32>
    %132 = math.exp %131 : vector<2x64xf32>
    %cst_54 = arith.constant 1.000000e+00 : f32
    %133 = vector.broadcast %cst_54 : f32 to vector<2x64xf32>
    %134 = arith.addf %133, %132 : vector<2x64xf32>
    %135 = arith.divf %133, %134 : vector<2x64xf32>
    %136 = vector.extract_strided_slice %135 {offsets = [0, 0], sizes = [2, 32], strides = [1, 1]} : vector<2x64xf32> to vector<2x32xf32>
    %137 = vector.extract_strided_slice %135 {offsets = [0, 32], sizes = [2, 32], strides = [1, 1]} : vector<2x64xf32> to vector<2x32xf32>
    %138 = vector.extract_strided_slice %123 {offsets = [0, 64], sizes = [2, 32], strides = [1, 1]} : vector<2x96xf32> to vector<2x32xf32>
    %139 = vector.extract_strided_slice %127 {offsets = [0, 64], sizes = [2, 32], strides = [1, 1]} : vector<2x96xf32> to vector<2x32xf32>
    %140 = arith.mulf %136, %139 : vector<2x32xf32>
    %141 = arith.addf %138, %140 : vector<2x32xf32>
    %142 = math.tanh %141 : vector<2x32xf32>
    %143 = arith.subf %100, %142 : vector<2x32xf32>
    %144 = arith.mulf %137, %143 : vector<2x32xf32>
    %145 = arith.addf %142, %144 : vector<2x32xf32>
    %c3 = arith.constant 3 : index
    %c0_55 = arith.constant 0 : index
    %c0_56 = arith.constant 0 : index
    %146 = vector.load %arg1[%c3, %c0_55, %c0_56] : memref<8x2x32xf32, #tpu.memory_space<vmem>>, vector<1x2x32xf32>
    %147 = vector.shape_cast %146 : vector<1x2x32xf32> to vector<2x32xf32>
    %c3_57 = arith.constant 3 : index
    %c0_58 = arith.constant 0 : index
    %c0_59 = arith.constant 0 : index
    %148 = vector.load %arg2[%c3_57, %c0_58, %c0_59] : memref<8x2x8xf32, #tpu.memory_space<vmem>>, vector<1x2x8xf32>
    %149 = vector.shape_cast %148 : vector<1x2x8xf32> to vector<2x8xf32>
    %150 = arith.truncf %147 : vector<2x32xf32> to vector<2x32xbf16>
    %cst_60 = arith.constant dense<0.000000e+00> : vector<2x32xf32>
    %151 = tpu.matmul %150, %3, %cst_60 {dimension_numbers = #tpu.dot_dimension_numbers<[1], [0], [0], [1], [0, 0, 1, 1], [], []>} : vector<2x32xbf16>, vector<32x32xbf16>, vector<2x32xf32> -> vector<2x32xf32>
    %152 = arith.truncf %149 : vector<2x8xf32> to vector<2x8xbf16>
    %cst_61 = arith.constant dense<0.000000e+00> : vector<2x32xf32>
    %153 = tpu.matmul %152, %4, %cst_61 {dimension_numbers = #tpu.dot_dimension_numbers<[1], [0], [0], [1], [0, 0, 1, 1], [], []>} : vector<2x8xbf16>, vector<8x32xbf16>, vector<2x32xf32> -> vector<2x32xf32>
    %154 = arith.addf %151, %153 : vector<2x32xf32>
    %155 = vector.broadcast %5 : vector<1x32xf32> to vector<2x32xf32>
    %156 = arith.addf %154, %155 : vector<2x32xf32>
    %cst_62 = arith.constant 0.000000e+00 : f32
    %157 = vector.broadcast %cst_62 : f32 to vector<2x32xf32>
    %158 = arith.cmpf ogt, %156, %157 : vector<2x32xf32>
    %cst_63 = arith.constant 0.000000e+00 : f32
    %159 = vector.broadcast %cst_63 : f32 to vector<2x32xf32>
    %160 = arith.minimumf %156, %159 : vector<2x32xf32>
    %161 = math.exp %160 : vector<2x32xf32>
    %cst_64 = arith.constant 1.000000e+00 : f32
    %162 = vector.broadcast %cst_64 : f32 to vector<2x32xf32>
    %163 = arith.subf %161, %162 : vector<2x32xf32>
    %164 = arith.select %158, %156, %163 : vector<2x32xi1>, vector<2x32xf32>
    %165 = arith.truncf %164 : vector<2x32xf32> to vector<2x32xbf16>
    %cst_65 = arith.constant dense<0.000000e+00> : vector<2x96xf32>
    %166 = tpu.matmul %165, %6, %cst_65 {dimension_numbers = #tpu.dot_dimension_numbers<[1], [0], [0], [1], [0, 0, 1, 1], [], []>} : vector<2x32xbf16>, vector<32x96xbf16>, vector<2x96xf32> -> vector<2x96xf32>
    %167 = vector.broadcast %8 : vector<1x96xf32> to vector<2x96xf32>
    %168 = arith.addf %166, %167 : vector<2x96xf32>
    %169 = arith.truncf %145 : vector<2x32xf32> to vector<2x32xbf16>
    %cst_66 = arith.constant dense<0.000000e+00> : vector<2x96xf32>
    %170 = tpu.matmul %169, %7, %cst_66 {dimension_numbers = #tpu.dot_dimension_numbers<[1], [0], [0], [1], [0, 0, 1, 1], [], []>} : vector<2x32xbf16>, vector<32x96xbf16>, vector<2x96xf32> -> vector<2x96xf32>
    %171 = vector.broadcast %9 : vector<1x96xf32> to vector<2x96xf32>
    %172 = arith.addf %170, %171 : vector<2x96xf32>
    %173 = vector.extract_strided_slice %168 {offsets = [0, 0], sizes = [2, 64], strides = [1, 1]} : vector<2x96xf32> to vector<2x64xf32>
    %174 = vector.extract_strided_slice %172 {offsets = [0, 0], sizes = [2, 64], strides = [1, 1]} : vector<2x96xf32> to vector<2x64xf32>
    %175 = arith.addf %173, %174 : vector<2x64xf32>
    %176 = arith.negf %175 : vector<2x64xf32>
    %177 = math.exp %176 : vector<2x64xf32>
    %cst_67 = arith.constant 1.000000e+00 : f32
    %178 = vector.broadcast %cst_67 : f32 to vector<2x64xf32>
    %179 = arith.addf %178, %177 : vector<2x64xf32>
    %180 = arith.divf %178, %179 : vector<2x64xf32>
    %181 = vector.extract_strided_slice %180 {offsets = [0, 0], sizes = [2, 32], strides = [1, 1]} : vector<2x64xf32> to vector<2x32xf32>
    %182 = vector.extract_strided_slice %180 {offsets = [0, 32], sizes = [2, 32], strides = [1, 1]} : vector<2x64xf32> to vector<2x32xf32>
    %183 = vector.extract_strided_slice %168 {offsets = [0, 64], sizes = [2, 32], strides = [1, 1]} : vector<2x96xf32> to vector<2x32xf32>
    %184 = vector.extract_strided_slice %172 {offsets = [0, 64], sizes = [2, 32], strides = [1, 1]} : vector<2x96xf32> to vector<2x32xf32>
    %185 = arith.mulf %181, %184 : vector<2x32xf32>
    %186 = arith.addf %183, %185 : vector<2x32xf32>
    %187 = math.tanh %186 : vector<2x32xf32>
    %188 = arith.subf %145, %187 : vector<2x32xf32>
    %189 = arith.mulf %182, %188 : vector<2x32xf32>
    %190 = arith.addf %187, %189 : vector<2x32xf32>
    %c4 = arith.constant 4 : index
    %c0_68 = arith.constant 0 : index
    %c0_69 = arith.constant 0 : index
    %191 = vector.load %arg1[%c4, %c0_68, %c0_69] : memref<8x2x32xf32, #tpu.memory_space<vmem>>, vector<1x2x32xf32>
    %192 = vector.shape_cast %191 : vector<1x2x32xf32> to vector<2x32xf32>
    %c4_70 = arith.constant 4 : index
    %c0_71 = arith.constant 0 : index
    %c0_72 = arith.constant 0 : index
    %193 = vector.load %arg2[%c4_70, %c0_71, %c0_72] : memref<8x2x8xf32, #tpu.memory_space<vmem>>, vector<1x2x8xf32>
    %194 = vector.shape_cast %193 : vector<1x2x8xf32> to vector<2x8xf32>
    %195 = arith.truncf %192 : vector<2x32xf32> to vector<2x32xbf16>
    %cst_73 = arith.constant dense<0.000000e+00> : vector<2x32xf32>
    %196 = tpu.matmul %195, %3, %cst_73 {dimension_numbers = #tpu.dot_dimension_numbers<[1], [0], [0], [1], [0, 0, 1, 1], [], []>} : vector<2x32xbf16>, vector<32x32xbf16>, vector<2x32xf32> -> vector<2x32xf32>
    %197 = arith.truncf %194 : vector<2x8xf32> to vector<2x8xbf16>
    %cst_74 = arith.constant dense<0.000000e+00> : vector<2x32xf32>
    %198 = tpu.matmul %197, %4, %cst_74 {dimension_numbers = #tpu.dot_dimension_numbers<[1], [0], [0], [1], [0, 0, 1, 1], [], []>} : vector<2x8xbf16>, vector<8x32xbf16>, vector<2x32xf32> -> vector<2x32xf32>
    %199 = arith.addf %196, %198 : vector<2x32xf32>
    %200 = vector.broadcast %5 : vector<1x32xf32> to vector<2x32xf32>
    %201 = arith.addf %199, %200 : vector<2x32xf32>
    %cst_75 = arith.constant 0.000000e+00 : f32
    %202 = vector.broadcast %cst_75 : f32 to vector<2x32xf32>
    %203 = arith.cmpf ogt, %201, %202 : vector<2x32xf32>
    %cst_76 = arith.constant 0.000000e+00 : f32
    %204 = vector.broadcast %cst_76 : f32 to vector<2x32xf32>
    %205 = arith.minimumf %201, %204 : vector<2x32xf32>
    %206 = math.exp %205 : vector<2x32xf32>
    %cst_77 = arith.constant 1.000000e+00 : f32
    %207 = vector.broadcast %cst_77 : f32 to vector<2x32xf32>
    %208 = arith.subf %206, %207 : vector<2x32xf32>
    %209 = arith.select %203, %201, %208 : vector<2x32xi1>, vector<2x32xf32>
    %210 = arith.truncf %209 : vector<2x32xf32> to vector<2x32xbf16>
    %cst_78 = arith.constant dense<0.000000e+00> : vector<2x96xf32>
    %211 = tpu.matmul %210, %6, %cst_78 {dimension_numbers = #tpu.dot_dimension_numbers<[1], [0], [0], [1], [0, 0, 1, 1], [], []>} : vector<2x32xbf16>, vector<32x96xbf16>, vector<2x96xf32> -> vector<2x96xf32>
    %212 = vector.broadcast %8 : vector<1x96xf32> to vector<2x96xf32>
    %213 = arith.addf %211, %212 : vector<2x96xf32>
    %214 = arith.truncf %190 : vector<2x32xf32> to vector<2x32xbf16>
    %cst_79 = arith.constant dense<0.000000e+00> : vector<2x96xf32>
    %215 = tpu.matmul %214, %7, %cst_79 {dimension_numbers = #tpu.dot_dimension_numbers<[1], [0], [0], [1], [0, 0, 1, 1], [], []>} : vector<2x32xbf16>, vector<32x96xbf16>, vector<2x96xf32> -> vector<2x96xf32>
    %216 = vector.broadcast %9 : vector<1x96xf32> to vector<2x96xf32>
    %217 = arith.addf %215, %216 : vector<2x96xf32>
    %218 = vector.extract_strided_slice %213 {offsets = [0, 0], sizes = [2, 64], strides = [1, 1]} : vector<2x96xf32> to vector<2x64xf32>
    %219 = vector.extract_strided_slice %217 {offsets = [0, 0], sizes = [2, 64], strides = [1, 1]} : vector<2x96xf32> to vector<2x64xf32>
    %220 = arith.addf %218, %219 : vector<2x64xf32>
    %221 = arith.negf %220 : vector<2x64xf32>
    %222 = math.exp %221 : vector<2x64xf32>
    %cst_80 = arith.constant 1.000000e+00 : f32
    %223 = vector.broadcast %cst_80 : f32 to vector<2x64xf32>
    %224 = arith.addf %223, %222 : vector<2x64xf32>
    %225 = arith.divf %223, %224 : vector<2x64xf32>
    %226 = vector.extract_strided_slice %225 {offsets = [0, 0], sizes = [2, 32], strides = [1, 1]} : vector<2x64xf32> to vector<2x32xf32>
    %227 = vector.extract_strided_slice %225 {offsets = [0, 32], sizes = [2, 32], strides = [1, 1]} : vector<2x64xf32> to vector<2x32xf32>
    %228 = vector.extract_strided_slice %213 {offsets = [0, 64], sizes = [2, 32], strides = [1, 1]} : vector<2x96xf32> to vector<2x32xf32>
    %229 = vector.extract_strided_slice %217 {offsets = [0, 64], sizes = [2, 32], strides = [1, 1]} : vector<2x96xf32> to vector<2x32xf32>
    %230 = arith.mulf %226, %229 : vector<2x32xf32>
    %231 = arith.addf %228, %230 : vector<2x32xf32>
    %232 = math.tanh %231 : vector<2x32xf32>
    %233 = arith.subf %190, %232 : vector<2x32xf32>
    %234 = arith.mulf %227, %233 : vector<2x32xf32>
    %235 = arith.addf %232, %234 : vector<2x32xf32>
    %c5 = arith.constant 5 : index
    %c0_81 = arith.constant 0 : index
    %c0_82 = arith.constant 0 : index
    %236 = vector.load %arg1[%c5, %c0_81, %c0_82] : memref<8x2x32xf32, #tpu.memory_space<vmem>>, vector<1x2x32xf32>
    %237 = vector.shape_cast %236 : vector<1x2x32xf32> to vector<2x32xf32>
    %c5_83 = arith.constant 5 : index
    %c0_84 = arith.constant 0 : index
    %c0_85 = arith.constant 0 : index
    %238 = vector.load %arg2[%c5_83, %c0_84, %c0_85] : memref<8x2x8xf32, #tpu.memory_space<vmem>>, vector<1x2x8xf32>
    %239 = vector.shape_cast %238 : vector<1x2x8xf32> to vector<2x8xf32>
    %240 = arith.truncf %237 : vector<2x32xf32> to vector<2x32xbf16>
    %cst_86 = arith.constant dense<0.000000e+00> : vector<2x32xf32>
    %241 = tpu.matmul %240, %3, %cst_86 {dimension_numbers = #tpu.dot_dimension_numbers<[1], [0], [0], [1], [0, 0, 1, 1], [], []>} : vector<2x32xbf16>, vector<32x32xbf16>, vector<2x32xf32> -> vector<2x32xf32>
    %242 = arith.truncf %239 : vector<2x8xf32> to vector<2x8xbf16>
    %cst_87 = arith.constant dense<0.000000e+00> : vector<2x32xf32>
    %243 = tpu.matmul %242, %4, %cst_87 {dimension_numbers = #tpu.dot_dimension_numbers<[1], [0], [0], [1], [0, 0, 1, 1], [], []>} : vector<2x8xbf16>, vector<8x32xbf16>, vector<2x32xf32> -> vector<2x32xf32>
    %244 = arith.addf %241, %243 : vector<2x32xf32>
    %245 = vector.broadcast %5 : vector<1x32xf32> to vector<2x32xf32>
    %246 = arith.addf %244, %245 : vector<2x32xf32>
    %cst_88 = arith.constant 0.000000e+00 : f32
    %247 = vector.broadcast %cst_88 : f32 to vector<2x32xf32>
    %248 = arith.cmpf ogt, %246, %247 : vector<2x32xf32>
    %cst_89 = arith.constant 0.000000e+00 : f32
    %249 = vector.broadcast %cst_89 : f32 to vector<2x32xf32>
    %250 = arith.minimumf %246, %249 : vector<2x32xf32>
    %251 = math.exp %250 : vector<2x32xf32>
    %cst_90 = arith.constant 1.000000e+00 : f32
    %252 = vector.broadcast %cst_90 : f32 to vector<2x32xf32>
    %253 = arith.subf %251, %252 : vector<2x32xf32>
    %254 = arith.select %248, %246, %253 : vector<2x32xi1>, vector<2x32xf32>
    %255 = arith.truncf %254 : vector<2x32xf32> to vector<2x32xbf16>
    %cst_91 = arith.constant dense<0.000000e+00> : vector<2x96xf32>
    %256 = tpu.matmul %255, %6, %cst_91 {dimension_numbers = #tpu.dot_dimension_numbers<[1], [0], [0], [1], [0, 0, 1, 1], [], []>} : vector<2x32xbf16>, vector<32x96xbf16>, vector<2x96xf32> -> vector<2x96xf32>
    %257 = vector.broadcast %8 : vector<1x96xf32> to vector<2x96xf32>
    %258 = arith.addf %256, %257 : vector<2x96xf32>
    %259 = arith.truncf %235 : vector<2x32xf32> to vector<2x32xbf16>
    %cst_92 = arith.constant dense<0.000000e+00> : vector<2x96xf32>
    %260 = tpu.matmul %259, %7, %cst_92 {dimension_numbers = #tpu.dot_dimension_numbers<[1], [0], [0], [1], [0, 0, 1, 1], [], []>} : vector<2x32xbf16>, vector<32x96xbf16>, vector<2x96xf32> -> vector<2x96xf32>
    %261 = vector.broadcast %9 : vector<1x96xf32> to vector<2x96xf32>
    %262 = arith.addf %260, %261 : vector<2x96xf32>
    %263 = vector.extract_strided_slice %258 {offsets = [0, 0], sizes = [2, 64], strides = [1, 1]} : vector<2x96xf32> to vector<2x64xf32>
    %264 = vector.extract_strided_slice %262 {offsets = [0, 0], sizes = [2, 64], strides = [1, 1]} : vector<2x96xf32> to vector<2x64xf32>
    %265 = arith.addf %263, %264 : vector<2x64xf32>
    %266 = arith.negf %265 : vector<2x64xf32>
    %267 = math.exp %266 : vector<2x64xf32>
    %cst_93 = arith.constant 1.000000e+00 : f32
    %268 = vector.broadcast %cst_93 : f32 to vector<2x64xf32>
    %269 = arith.addf %268, %267 : vector<2x64xf32>
    %270 = arith.divf %268, %269 : vector<2x64xf32>
    %271 = vector.extract_strided_slice %270 {offsets = [0, 0], sizes = [2, 32], strides = [1, 1]} : vector<2x64xf32> to vector<2x32xf32>
    %272 = vector.extract_strided_slice %270 {offsets = [0, 32], sizes = [2, 32], strides = [1, 1]} : vector<2x64xf32> to vector<2x32xf32>
    %273 = vector.extract_strided_slice %258 {offsets = [0, 64], sizes = [2, 32], strides = [1, 1]} : vector<2x96xf32> to vector<2x32xf32>
    %274 = vector.extract_strided_slice %262 {offsets = [0, 64], sizes = [2, 32], strides = [1, 1]} : vector<2x96xf32> to vector<2x32xf32>
    %275 = arith.mulf %271, %274 : vector<2x32xf32>
    %276 = arith.addf %273, %275 : vector<2x32xf32>
    %277 = math.tanh %276 : vector<2x32xf32>
    %278 = arith.subf %235, %277 : vector<2x32xf32>
    %279 = arith.mulf %272, %278 : vector<2x32xf32>
    %280 = arith.addf %277, %279 : vector<2x32xf32>
    %c6 = arith.constant 6 : index
    %c0_94 = arith.constant 0 : index
    %c0_95 = arith.constant 0 : index
    %281 = vector.load %arg1[%c6, %c0_94, %c0_95] : memref<8x2x32xf32, #tpu.memory_space<vmem>>, vector<1x2x32xf32>
    %282 = vector.shape_cast %281 : vector<1x2x32xf32> to vector<2x32xf32>
    %c6_96 = arith.constant 6 : index
    %c0_97 = arith.constant 0 : index
    %c0_98 = arith.constant 0 : index
    %283 = vector.load %arg2[%c6_96, %c0_97, %c0_98] : memref<8x2x8xf32, #tpu.memory_space<vmem>>, vector<1x2x8xf32>
    %284 = vector.shape_cast %283 : vector<1x2x8xf32> to vector<2x8xf32>
    %285 = arith.truncf %282 : vector<2x32xf32> to vector<2x32xbf16>
    %cst_99 = arith.constant dense<0.000000e+00> : vector<2x32xf32>
    %286 = tpu.matmul %285, %3, %cst_99 {dimension_numbers = #tpu.dot_dimension_numbers<[1], [0], [0], [1], [0, 0, 1, 1], [], []>} : vector<2x32xbf16>, vector<32x32xbf16>, vector<2x32xf32> -> vector<2x32xf32>
    %287 = arith.truncf %284 : vector<2x8xf32> to vector<2x8xbf16>
    %cst_100 = arith.constant dense<0.000000e+00> : vector<2x32xf32>
    %288 = tpu.matmul %287, %4, %cst_100 {dimension_numbers = #tpu.dot_dimension_numbers<[1], [0], [0], [1], [0, 0, 1, 1], [], []>} : vector<2x8xbf16>, vector<8x32xbf16>, vector<2x32xf32> -> vector<2x32xf32>
    %289 = arith.addf %286, %288 : vector<2x32xf32>
    %290 = vector.broadcast %5 : vector<1x32xf32> to vector<2x32xf32>
    %291 = arith.addf %289, %290 : vector<2x32xf32>
    %cst_101 = arith.constant 0.000000e+00 : f32
    %292 = vector.broadcast %cst_101 : f32 to vector<2x32xf32>
    %293 = arith.cmpf ogt, %291, %292 : vector<2x32xf32>
    %cst_102 = arith.constant 0.000000e+00 : f32
    %294 = vector.broadcast %cst_102 : f32 to vector<2x32xf32>
    %295 = arith.minimumf %291, %294 : vector<2x32xf32>
    %296 = math.exp %295 : vector<2x32xf32>
    %cst_103 = arith.constant 1.000000e+00 : f32
    %297 = vector.broadcast %cst_103 : f32 to vector<2x32xf32>
    %298 = arith.subf %296, %297 : vector<2x32xf32>
    %299 = arith.select %293, %291, %298 : vector<2x32xi1>, vector<2x32xf32>
    %300 = arith.truncf %299 : vector<2x32xf32> to vector<2x32xbf16>
    %cst_104 = arith.constant dense<0.000000e+00> : vector<2x96xf32>
    %301 = tpu.matmul %300, %6, %cst_104 {dimension_numbers = #tpu.dot_dimension_numbers<[1], [0], [0], [1], [0, 0, 1, 1], [], []>} : vector<2x32xbf16>, vector<32x96xbf16>, vector<2x96xf32> -> vector<2x96xf32>
    %302 = vector.broadcast %8 : vector<1x96xf32> to vector<2x96xf32>
    %303 = arith.addf %301, %302 : vector<2x96xf32>
    %304 = arith.truncf %280 : vector<2x32xf32> to vector<2x32xbf16>
    %cst_105 = arith.constant dense<0.000000e+00> : vector<2x96xf32>
    %305 = tpu.matmul %304, %7, %cst_105 {dimension_numbers = #tpu.dot_dimension_numbers<[1], [0], [0], [1], [0, 0, 1, 1], [], []>} : vector<2x32xbf16>, vector<32x96xbf16>, vector<2x96xf32> -> vector<2x96xf32>
    %306 = vector.broadcast %9 : vector<1x96xf32> to vector<2x96xf32>
    %307 = arith.addf %305, %306 : vector<2x96xf32>
    %308 = vector.extract_strided_slice %303 {offsets = [0, 0], sizes = [2, 64], strides = [1, 1]} : vector<2x96xf32> to vector<2x64xf32>
    %309 = vector.extract_strided_slice %307 {offsets = [0, 0], sizes = [2, 64], strides = [1, 1]} : vector<2x96xf32> to vector<2x64xf32>
    %310 = arith.addf %308, %309 : vector<2x64xf32>
    %311 = arith.negf %310 : vector<2x64xf32>
    %312 = math.exp %311 : vector<2x64xf32>
    %cst_106 = arith.constant 1.000000e+00 : f32
    %313 = vector.broadcast %cst_106 : f32 to vector<2x64xf32>
    %314 = arith.addf %313, %312 : vector<2x64xf32>
    %315 = arith.divf %313, %314 : vector<2x64xf32>
    %316 = vector.extract_strided_slice %315 {offsets = [0, 0], sizes = [2, 32], strides = [1, 1]} : vector<2x64xf32> to vector<2x32xf32>
    %317 = vector.extract_strided_slice %315 {offsets = [0, 32], sizes = [2, 32], strides = [1, 1]} : vector<2x64xf32> to vector<2x32xf32>
    %318 = vector.extract_strided_slice %303 {offsets = [0, 64], sizes = [2, 32], strides = [1, 1]} : vector<2x96xf32> to vector<2x32xf32>
    %319 = vector.extract_strided_slice %307 {offsets = [0, 64], sizes = [2, 32], strides = [1, 1]} : vector<2x96xf32> to vector<2x32xf32>
    %320 = arith.mulf %316, %319 : vector<2x32xf32>
    %321 = arith.addf %318, %320 : vector<2x32xf32>
    %322 = math.tanh %321 : vector<2x32xf32>
    %323 = arith.subf %280, %322 : vector<2x32xf32>
    %324 = arith.mulf %317, %323 : vector<2x32xf32>
    %325 = arith.addf %322, %324 : vector<2x32xf32>
    %c7 = arith.constant 7 : index
    %c0_107 = arith.constant 0 : index
    %c0_108 = arith.constant 0 : index
    %326 = vector.load %arg1[%c7, %c0_107, %c0_108] : memref<8x2x32xf32, #tpu.memory_space<vmem>>, vector<1x2x32xf32>
    %327 = vector.shape_cast %326 : vector<1x2x32xf32> to vector<2x32xf32>
    %c7_109 = arith.constant 7 : index
    %c0_110 = arith.constant 0 : index
    %c0_111 = arith.constant 0 : index
    %328 = vector.load %arg2[%c7_109, %c0_110, %c0_111] : memref<8x2x8xf32, #tpu.memory_space<vmem>>, vector<1x2x8xf32>
    %329 = vector.shape_cast %328 : vector<1x2x8xf32> to vector<2x8xf32>
    %330 = arith.truncf %327 : vector<2x32xf32> to vector<2x32xbf16>
    %cst_112 = arith.constant dense<0.000000e+00> : vector<2x32xf32>
    %331 = tpu.matmul %330, %3, %cst_112 {dimension_numbers = #tpu.dot_dimension_numbers<[1], [0], [0], [1], [0, 0, 1, 1], [], []>} : vector<2x32xbf16>, vector<32x32xbf16>, vector<2x32xf32> -> vector<2x32xf32>
    %332 = arith.truncf %329 : vector<2x8xf32> to vector<2x8xbf16>
    %cst_113 = arith.constant dense<0.000000e+00> : vector<2x32xf32>
    %333 = tpu.matmul %332, %4, %cst_113 {dimension_numbers = #tpu.dot_dimension_numbers<[1], [0], [0], [1], [0, 0, 1, 1], [], []>} : vector<2x8xbf16>, vector<8x32xbf16>, vector<2x32xf32> -> vector<2x32xf32>
    %334 = arith.addf %331, %333 : vector<2x32xf32>
    %335 = vector.broadcast %5 : vector<1x32xf32> to vector<2x32xf32>
    %336 = arith.addf %334, %335 : vector<2x32xf32>
    %cst_114 = arith.constant 0.000000e+00 : f32
    %337 = vector.broadcast %cst_114 : f32 to vector<2x32xf32>
    %338 = arith.cmpf ogt, %336, %337 : vector<2x32xf32>
    %cst_115 = arith.constant 0.000000e+00 : f32
    %339 = vector.broadcast %cst_115 : f32 to vector<2x32xf32>
    %340 = arith.minimumf %336, %339 : vector<2x32xf32>
    %341 = math.exp %340 : vector<2x32xf32>
    %cst_116 = arith.constant 1.000000e+00 : f32
    %342 = vector.broadcast %cst_116 : f32 to vector<2x32xf32>
    %343 = arith.subf %341, %342 : vector<2x32xf32>
    %344 = arith.select %338, %336, %343 : vector<2x32xi1>, vector<2x32xf32>
    %345 = arith.truncf %344 : vector<2x32xf32> to vector<2x32xbf16>
    %cst_117 = arith.constant dense<0.000000e+00> : vector<2x96xf32>
    %346 = tpu.matmul %345, %6, %cst_117 {dimension_numbers = #tpu.dot_dimension_numbers<[1], [0], [0], [1], [0, 0, 1, 1], [], []>} : vector<2x32xbf16>, vector<32x96xbf16>, vector<2x96xf32> -> vector<2x96xf32>
    %347 = vector.broadcast %8 : vector<1x96xf32> to vector<2x96xf32>
    %348 = arith.addf %346, %347 : vector<2x96xf32>
    %349 = arith.truncf %325 : vector<2x32xf32> to vector<2x32xbf16>
    %cst_118 = arith.constant dense<0.000000e+00> : vector<2x96xf32>
    %350 = tpu.matmul %349, %7, %cst_118 {dimension_numbers = #tpu.dot_dimension_numbers<[1], [0], [0], [1], [0, 0, 1, 1], [], []>} : vector<2x32xbf16>, vector<32x96xbf16>, vector<2x96xf32> -> vector<2x96xf32>
    %351 = vector.broadcast %9 : vector<1x96xf32> to vector<2x96xf32>
    %352 = arith.addf %350, %351 : vector<2x96xf32>
    %353 = vector.extract_strided_slice %348 {offsets = [0, 0], sizes = [2, 64], strides = [1, 1]} : vector<2x96xf32> to vector<2x64xf32>
    %354 = vector.extract_strided_slice %352 {offsets = [0, 0], sizes = [2, 64], strides = [1, 1]} : vector<2x96xf32> to vector<2x64xf32>
    %355 = arith.addf %353, %354 : vector<2x64xf32>
    %356 = arith.negf %355 : vector<2x64xf32>
    %357 = math.exp %356 : vector<2x64xf32>
    %cst_119 = arith.constant 1.000000e+00 : f32
    %358 = vector.broadcast %cst_119 : f32 to vector<2x64xf32>
    %359 = arith.addf %358, %357 : vector<2x64xf32>
    %360 = arith.divf %358, %359 : vector<2x64xf32>
    %361 = vector.extract_strided_slice %360 {offsets = [0, 0], sizes = [2, 32], strides = [1, 1]} : vector<2x64xf32> to vector<2x32xf32>
    %362 = vector.extract_strided_slice %360 {offsets = [0, 32], sizes = [2, 32], strides = [1, 1]} : vector<2x64xf32> to vector<2x32xf32>
    %363 = vector.extract_strided_slice %348 {offsets = [0, 64], sizes = [2, 32], strides = [1, 1]} : vector<2x96xf32> to vector<2x32xf32>
    %364 = vector.extract_strided_slice %352 {offsets = [0, 64], sizes = [2, 32], strides = [1, 1]} : vector<2x96xf32> to vector<2x32xf32>
    %365 = arith.mulf %361, %364 : vector<2x32xf32>
    %366 = arith.addf %363, %365 : vector<2x32xf32>
    %367 = math.tanh %366 : vector<2x32xf32>
    %368 = arith.subf %325, %367 : vector<2x32xf32>
    %369 = arith.mulf %362, %368 : vector<2x32xf32>
    %370 = arith.addf %367, %369 : vector<2x32xf32>
    %c0_120 = arith.constant 0 : index
    %c0_121 = arith.constant 0 : index
    %371 = vector.load %arg12[%c0_120, %c0_121] : memref<2x32xf32, #tpu.memory_space<vmem>>, vector<2x32xf32>
    tpu.vector_store %arg12[%c0_120, %c0_121], %370 {strides = array<i32>} : memref<2x32xf32, #tpu.memory_space<vmem>>, vector<2x32xf32>,
    %c0_i32_122 = arith.constant 0 : i32
    %372 = arith.cmpi eq, %arg0, %c0_i32_122 : i32
    %373 = arith.extui %372 : i1 to i32
    %c0_i32_123 = arith.constant 0 : i32
    %374 = arith.cmpi ne, %373, %c0_i32_123 : i32
    scf.if %374 {
      %c0_124 = arith.constant 0 : index
      %c0_125 = arith.constant 0 : index
      %375 = vector.load %arg11[%c0_124, %c0_125] : memref<2x32xf32, #tpu.memory_space<vmem>>, vector<2x32xf32>
      tpu.vector_store %arg11[%c0_124, %c0_125], %370 {strides = array<i32>} : memref<2x32xf32, #tpu.memory_space<vmem>>, vector<2x32xf32>,
    } else {
    }
    return
  }
  func.func @transform_0(%arg0: i32) -> (i32, i32, i32) {
    %c0_i32 = arith.constant 0 : i32
    %c0_i32_0 = arith.constant 0 : i32
    %c0_i32_1 = arith.constant 0 : i32
    return %arg0, %c0_i32, %c0_i32_0 : i32, i32, i32
  }
  func.func @transform_1(%arg0: i32) -> (i32, i32, i32) {
    %c0_i32 = arith.constant 0 : i32
    %c0_i32_0 = arith.constant 0 : i32
    %c0_i32_1 = arith.constant 0 : i32
    return %arg0, %c0_i32, %c0_i32_0 : i32, i32, i32
  }
  func.func @transform_2(%arg0: i32) -> (i32, i32) {
    %c0_i32 = arith.constant 0 : i32
    %c0_i32_0 = arith.constant 0 : i32
    %c0_i32_1 = arith.constant 0 : i32
    return %c0_i32, %c0_i32_0 : i32, i32
  }
  func.func @transform_3(%arg0: i32) -> (i32, i32) {
    %c0_i32 = arith.constant 0 : i32
    %c0_i32_0 = arith.constant 0 : i32
    %c0_i32_1 = arith.constant 0 : i32
    return %c0_i32, %c0_i32_0 : i32, i32
  }
  func.func @transform_4(%arg0: i32) -> (i32, i32) {
    %c0_i32 = arith.constant 0 : i32
    %c0_i32_0 = arith.constant 0 : i32
    %c0_i32_1 = arith.constant 0 : i32
    return %c0_i32, %c0_i32_0 : i32, i32
  }
  func.func @transform_5(%arg0: i32) -> (i32, i32) {
    %c0_i32 = arith.constant 0 : i32
    %c0_i32_0 = arith.constant 0 : i32
    %c0_i32_1 = arith.constant 0 : i32
    return %c0_i32, %c0_i32_0 : i32, i32
  }
  func.func @transform_6(%arg0: i32) -> (i32, i32) {
    %c0_i32 = arith.constant 0 : i32
    %c0_i32_0 = arith.constant 0 : i32
    %c0_i32_1 = arith.constant 0 : i32
    return %c0_i32, %c0_i32_0 : i32, i32
  }
  func.func @transform_7(%arg0: i32) -> (i32, i32) {
    %c0_i32 = arith.constant 0 : i32
    %c0_i32_0 = arith.constant 0 : i32
    %c0_i32_1 = arith.constant 0 : i32
    return %c0_i32, %c0_i32_0 : i32, i32
  }
  func.func @transform_8(%arg0: i32) -> (i32, i32) {
    %c0_i32 = arith.constant 0 : i32
    %c0_i32_0 = arith.constant 0 : i32
    %c0_i32_1 = arith.constant 0 : i32
    return %c0_i32, %c0_i32_0 : i32, i32
  }
  func.func @transform_9(%arg0: i32) -> (i32, i32) {
    %c0_i32 = arith.constant 0 : i32
    %c0_i32_0 = arith.constant 0 : i32
    %c0_i32_1 = arith.constant 0 : i32
    return %c0_i32, %c0_i32_0 : i32, i32
  }
  func.func @transform_10(%arg0: i32) -> (i32, i32) {
    %c0_i32 = arith.constant 0 : i32
    %c0_i32_0 = arith.constant 0 : i32
    %c0_i32_1 = arith.constant 0 : i32
    return %c0_i32, %c0_i32_0 : i32, i32
  }
}

</mosaic_0001>

<llo_original>
// kernel: tpu_custom_call.1
$region0: #{tpu_custom_call.1}
  #allocation0 [shape = 'u32[]', space=smem, size = 0x4, offset = 0x4, fixed_abs, tag = 'smem constant byte address 0x4 - core index']
  #allocation1 [shape = 'u32[144,128]{1,0:T(1,128)}', space=vmem, size = 0x12000, scoped, tag = 'internal scratch']
  #allocation2 [shape = 'f32[2,32]{1,0:T(2,128)}', space=vmem, size = 0x400, scoped, tag = 'scratch operand']
  %s0 = inlined_call_operand.hbm [shape: f32[8,2,32], index: 0, kind: input, shape index: {}]
  %s1 = inlined_call_operand.hbm [shape: f32[8,2,8], index: 1, kind: input, shape index: {}]
  %s2 = inlined_call_operand.vmem [shape: f32[2,32], index: 2, kind: input, shape index: {}]
  %s3 = inlined_call_operand.hbm [shape: bf16[32,32], index: 3, kind: input, shape index: {}]
  %s4 = inlined_call_operand.vmem [shape: bf16[8,32], index: 4, kind: input, shape index: {}]
  %s5 = inlined_call_operand.vmem [shape: f32[1,32], index: 5, kind: input, shape index: {}]
  %s6 = inlined_call_operand.hbm [shape: bf16[32,96], index: 6, kind: input, shape index: {}]
  %s7 = inlined_call_operand.hbm [shape: bf16[32,96], index: 7, kind: input, shape index: {}]
  %s8 = inlined_call_operand.vmem [shape: f32[1,96], index: 8, kind: input, shape index: {}]
  %s9 = inlined_call_operand.vmem [shape: f32[1,96], index: 9, kind: input, shape index: {}]
  %s10 = inlined_call_operand.hbm [shape: f32[2,32], index: 10, kind: output, shape index: {}]
  %s11 = sld [smem:[#allocation0]]
  $region78: #{tpu_custom_call.1} parent=0
    _
  %s13 = ssub.s32 1, %s11
  %s14 = scalar_select 0, %s13, %s11
  $region1: #{tpu_custom_call.1} parent=0
    #allocation3 [shape = 'u8[8192]{0}', space=vmem, size = 0x2000, scoped, tag = 'input window, operand 0, single buffered']
    #allocation4 [shape = 's32[1]{0}', space=sflag, size = 0x4, scoped, tag = 'scoped memory for tpu_custom_call.1']
    #allocation5 [shape = 's32[1]{0}', space=sflag, size = 0x4, scoped, tag = 'scoped memory for tpu_custom_call.1']
    #allocation6 [shape = 'u8[8192]{0}', space=vmem, size = 0x2000, scoped, tag = 'input window, operand 1, single buffered']
    #allocation7 [shape = 's32[1]{0}', space=sflag, size = 0x4, scoped, tag = 'scoped memory for tpu_custom_call.1']
    #allocation8 [shape = 'u8[8192]{0}', space=vmem, size = 0x2000, scoped, tag = 'input window, operand 3, single buffered']
    #allocation9 [shape = 'u8[8192]{0}', space=vmem, size = 0x2000, scoped, tag = 'input window, operand 6, single buffered']
    #allocation10 [shape = 's32[1]{0}', space=sflag, size = 0x4, scoped, tag = 'scoped memory for tpu_custom_call.1']
    #allocation11 [shape = 'u8[8192]{0}', space=vmem, size = 0x2000, scoped, tag = 'input window, operand 7, single buffered']
    #allocation12 [shape = 'u8[1024]{0}', space=vmem, size = 0x400, scoped, tag = 'output window, operand 0, single buffered']
    %15 = vsyncpa [#allocation4], 0
    %16 = vsyncpa [#allocation7], 0
    %17 = vsyncpa [#allocation10], 0
    %18 = vsyncpa [#allocation5], 0
    // Predicated region
    $region2: #{tpu_custom_call.1} parent=1 // pred_check
      _
    $region3: #{tpu_custom_call.1} parent=1 // pred_check_branch
      %20 = sbr.rel (0) target = $region5
    $region4: #{tpu_custom_call.1} parent=1 // pred_region
      %s22 = ssub.s32 256, 256
      %23 = vsyncadd [#allocation4], %s22
      %s24 = sshll.u32 [#allocation3], 4
      %s25 = int_to_ptr.vmem [resolvable:$true] %s24
      %30 = dma.hbm_to_vmem [thread:$0]  %s0, 256, %s25, [#allocation4], 32, 32, 2
    $region5: #{tpu_custom_call.1} parent=1 // pred_fallthru
      _
    // Predicated region
    $region6: #{tpu_custom_call.1} parent=1 // pred_check
      _
    $region7: #{tpu_custom_call.1} parent=1 // pred_check_branch
      %32 = sbr.rel (0) target = $region9
    $region8: #{tpu_custom_call.1} parent=1 // pred_region
      %s34 = ssub.s32 256, 256
      %35 = vsyncadd [#allocation7], %s34
      %s36 = sshll.u32 [#allocation6], 4
      %s37 = int_to_ptr.vmem [resolvable:$true] %s36
      %42 = dma.hbm_to_vmem [thread:$0]  %s1, 256, %s37, [#allocation7], 32, 32, 2
    $region9: #{tpu_custom_call.1} parent=1 // pred_fallthru
      _
    // Predicated region
    $region10: #{tpu_custom_call.1} parent=1 // pred_check
      _
    $region11: #{tpu_custom_call.1} parent=1 // pred_check_branch
      %44 = sbr.rel (0) target = $region13
    $region12: #{tpu_custom_call.1} parent=1 // pred_region
      _
    $region13: #{tpu_custom_call.1} parent=1 // pred_fallthru
      _
    // Predicated region
    $region14: #{tpu_custom_call.1} parent=1 // pred_check
      _
    $region15: #{tpu_custom_call.1} parent=1 // pred_check_branch
      %46 = sbr.rel (0) target = $region17
    $region16: #{tpu_custom_call.1} parent=1 // pred_region
      %s48 = ssub.s32 256, 256
      %49 = vsyncadd [#allocation7], %s48
      %s50 = sshll.u32 [#allocation8], 4
      %s51 = int_to_ptr.vmem [resolvable:$true] %s50
      %56 = dma.hbm_to_vmem [thread:$0]  %s3, 256, %s51, [#allocation7], 64, 64, 4
    $region17: #{tpu_custom_call.1} parent=1 // pred_fallthru
      _
    // Predicated region
    $region18: #{tpu_custom_call.1} parent=1 // pred_check
      _
    $region19: #{tpu_custom_call.1} parent=1 // pred_check_branch
      %58 = sbr.rel (0) target = $region21
    $region20: #{tpu_custom_call.1} parent=1 // pred_region
      _
    $region21: #{tpu_custom_call.1} parent=1 // pred_fallthru
      _
    // Predicated region
    $region22: #{tpu_custom_call.1} parent=1 // pred_check
      _
    $region23: #{tpu_custom_call.1} parent=1 // pred_check_branch
      %60 = sbr.rel (0) target = $region25
    $region24: #{tpu_custom_call.1} parent=1 // pred_region
      _
    $region25: #{tpu_custom_call.1} parent=1 // pred_fallthru
      _
    // Predicated region
    $region26: #{tpu_custom_call.1} parent=1 // pred_check
      _
    $region27: #{tpu_custom_call.1} parent=1 // pred_check_branch
      %62 = sbr.rel (0) target = $region29
    $region28: #{tpu_custom_call.1} parent=1 // pred_region
      %s64 = ssub.s32 256, 256
      %65 = vsyncadd [#allocation10], %s64
      %s66 = sshll.u32 [#allocation9], 4
      %s67 = int_to_ptr.vmem [resolvable:$true] %s66
      %72 = dma.hbm_to_vmem [thread:$0]  %s6, 256, %s67, [#allocation10], 64, 64, 4
    $region29: #{tpu_custom_call.1} parent=1 // pred_fallthru
      _
    // Predicated region
    $region30: #{tpu_custom_call.1} parent=1 // pred_check
      _
    $region31: #{tpu_custom_call.1} parent=1 // pred_check_branch
      %74 = sbr.rel (0) target = $region33
    $region32: #{tpu_custom_call.1} parent=1 // pred_region
      %s76 = ssub.s32 256, 256
      %77 = vsyncadd [#allocation10], %s76
      %s78 = sshll.u32 [#allocation11], 4
      %s79 = int_to_ptr.vmem [resolvable:$true] %s78
      %84 = dma.hbm_to_vmem [thread:$0]  %s7, 256, %s79, [#allocation10], 64, 64, 4
    $region33: #{tpu_custom_call.1} parent=1 // pred_fallthru
      _
    // Predicated region
    $region34: #{tpu_custom_call.1} parent=1 // pred_check
      _
    $region35: #{tpu_custom_call.1} parent=1 // pred_check_branch
      %86 = sbr.rel (0) target = $region37
    $region36: #{tpu_custom_call.1} parent=1 // pred_region
      _
    $region37: #{tpu_custom_call.1} parent=1 // pred_fallthru
      _
    // Predicated region
    $region38: #{tpu_custom_call.1} parent=1 // pred_check
      _
    $region39: #{tpu_custom_call.1} parent=1 // pred_check_branch
      %88 = sbr.rel (0) target = $region41
    $region40: #{tpu_custom_call.1} parent=1 // pred_region
      _
    $region41: #{tpu_custom_call.1} parent=1 // pred_fallthru
      _
    // Predicated region
    $region42: #{tpu_custom_call.1} parent=1 // pred_check
      _
    $region43: #{tpu_custom_call.1} parent=1 // pred_check_branch
      %90 = sbr.rel (0) target = $region45
    $region44: #{tpu_custom_call.1} parent=1 // pred_region
      %91 = dma.done [#allocation4], 256
    $region45: #{tpu_custom_call.1} parent=1 // pred_fallthru
      _
    // Predicated region
    $region46: #{tpu_custom_call.1} parent=1 // pred_check
      _
    $region47: #{tpu_custom_call.1} parent=1 // pred_check_branch
      %93 = sbr.rel (0) target = $region49
    $region48: #{tpu_custom_call.1} parent=1 // pred_region
      %94 = dma.done [#allocation7], 256
    $region49: #{tpu_custom_call.1} parent=1 // pred_fallthru
      _
    // Predicated region
    $region50: #{tpu_custom_call.1} parent=1 // pred_check
      _
    $region51: #{tpu_custom_call.1} parent=1 // pred_check_branch
      %96 = sbr.rel (0) target = $region53
    $region52: #{tpu_custom_call.1} parent=1 // pred_region
      %97 = dma.done [#allocation7], 256
    $region53: #{tpu_custom_call.1} parent=1 // pred_fallthru
      _
    // Predicated region
    $region54: #{tpu_custom_call.1} parent=1 // pred_check
      _
    $region55: #{tpu_custom_call.1} parent=1 // pred_check_branch
      %99 = sbr.rel (0) target = $region57
    $region56: #{tpu_custom_call.1} parent=1 // pred_region
      %100 = dma.done [#allocation10], 256
    $region57: #{tpu_custom_call.1} parent=1 // pred_fallthru
      _
    // Predicated region
    $region58: #{tpu_custom_call.1} parent=1 // pred_check
      _
    $region59: #{tpu_custom_call.1} parent=1 // pred_check_branch
      %102 = sbr.rel (0) target = $region61
    $region60: #{tpu_custom_call.1} parent=1 // pred_region
      %103 = dma.done [#allocation10], 256
    $region61: #{tpu_custom_call.1} parent=1 // pred_fallthru
      _
    %p105 = scmp.eq.s32.totalorder 0, 0
    // Predicated region
    $region62: #{tpu_custom_call.1} parent=1 // pred_check
      %p106 = pneg %p105
    $region63: #{tpu_custom_call.1} parent=1 // pred_check_branch
      %108 = sbr.rel (%p106) target = $region65
    $region64: #{tpu_custom_call.1} parent=1 // pred_region
      %v109 = vld [vmem:[%s2] sm:$0x3]
      %vm110 = vcmask 254976
      %111 = vst.msk [vmem:[#allocation2] sm:$0x3] %vm110, %v109
    $region65: #{tpu_custom_call.1} parent=1 // pred_fallthru
      _
    %v112 = vld [vmem:[#allocation8] sm:$0xf]
    %v113 = vld [vmem:[#allocation8 + $0x4] sm:$0xf]
    %v114 = vld [vmem:[#allocation8 + $0x8] sm:$0xf]
    %v115 = vld [vmem:[#allocation8 + $0xc] sm:$0xf]
    %v116 = vld [vmem:[%s4] sm:$0xf]
    %v117 = vld [vmem:[%s5] sm:$0x1]
    %v118 = vld [vmem:[#allocation9] sm:$0xf]
    %v119 = vld [vmem:[#allocation9 + $0x4] sm:$0xf]
    %v120 = vld [vmem:[#allocation9 + $0x8] sm:$0xf]
    %v121 = vld [vmem:[#allocation9 + $0xc] sm:$0xf]
    %v122 = vld [vmem:[#allocation11] sm:$0xf]
    %v123 = vld [vmem:[#allocation11 + $0x4] sm:$0xf]
    %v124 = vld [vmem:[#allocation11 + $0x8] sm:$0xf]
    %v125 = vld [vmem:[#allocation11 + $0xc] sm:$0xf]
    %v126 = vld [vmem:[%s8] sm:$0x1]
    %v127 = vld [vmem:[%s9] sm:$0x1]
    %v128 = vld [vmem:[#allocation2] sm:$0x3]
    %v129 = vld [vmem:[#allocation3] sm:$0x3]
    %v130 = vld [vmem:[#allocation6] sm:$0x3]
    %v131 = vpack.c.bf16 %v129, %v129
    %v132 = vpack.c.bf16 %v130, %v130
    %vm133 = vcmask 64512
    %v135 = vsel %vm133, %v132, 0
    %vm137 = vcmask 1043456
    %v139 = vsel %vm137, %v116, 0
    %141 = vmatprep.subr.bf16.mxu0 0
    %142 = vmatpush1.bf16.msra.mxu0 0
    %143 = vmatprep.subr.bf16.mxu0 0
    %144 = vmatpush1.bf16.msra.mxu0 0
    %145 = vmatprep.subr.bf16.mxu0 0
    %146 = vmatpush1.bf16.msra.mxu0 0
    %147 = vmatprep.subr.bf16.mxu0 0
    %148 = vmatpush1.bf16.msra.mxu0 0
    %149 = vmatprep.subr.bf16.mxu0 0
    %150 = vmatpush1.bf16.msra.mxu0 0
    %151 = vmatprep.subr.bf16.mxu0 0
    %152 = vmatpush1.bf16.msra.mxu0 0
    %153 = vmatprep.subr.bf16.mxu0 0
    %154 = vmatpush1.bf16.msra.mxu0 0
    %155 = vmatprep.subr.bf16.mxu0 0
    %156 = vmatpush1.bf16.msra.mxu0 %v139
    %157 = vmatprep.subr.bf16.mxu0 0
    %158 = vmatpush2.bf16.msra.mxu0 0
    %159 = vmatprep.subr.bf16.mxu0 0
    %160 = vmatpush2.bf16.msra.mxu0 0
    %161 = vmatprep.subr.bf16.mxu0 0
    %162 = vmatpush2.bf16.msra.mxu0 0
    %163 = vmatprep.subr.bf16.mxu0 0
    %164 = vmatpush2.bf16.msra.mxu0 0
    %165 = vmatprep.subr.bf16.mxu0 0
    %166 = vmatpush2.bf16.msra.mxu0 0
    %167 = vmatprep.subr.bf16.mxu0 0
    %168 = vmatpush2.bf16.msra.mxu0 0
    %169 = vmatprep.subr.bf16.mxu0 0
    %170 = vmatpush2.bf16.msra.mxu0 0
    %171 = vmatprep.subr.bf16.mxu0 0
    %172 = vmatpush2.bf16.msra.mxu0 0
    %173 = vmatprep.mubr.bf16.mxu0 0
    %174 = vmatmul.mubr.bf16.gmra.mxu0 %v135
    %v175 = vpop.f32.mrf.mxu0
    %v176 = vadd.f32 0.0, %v175
    %v177 = vpop.f32.mrf.mxu0
    %v178 = vpop.f32.mrf.mxu0
    %v179 = vpop.f32.mrf.mxu0
    %180 = vdwg.mxu0
    %v185 = vunpack.c.l.b16 %v112
    %v186 = vunpack.c.l.b16 %v113
    %v187 = vunpack.c.l.b16 %v114
    %v188 = vunpack.c.l.b16 %v115
    %v189 = vpack.c.b16 %v186, %v185
    %v190 = vpack.c.b16 %v188, %v187
    %vm193 = vcmask 261120
    %v195 = vsel %vm193, %v131, 0
    %197 = vmatprep.subr.bf16.mxu0 0
    %198 = vmatpush1.bf16.msra.mxu0 0
    %199 = vmatprep.subr.bf16.mxu0 0
    %200 = vmatpush1.bf16.msra.mxu0 0
    %201 = vmatprep.subr.bf16.mxu0 0
    %202 = vmatpush1.bf16.msra.mxu0 0
    %203 = vmatprep.subr.bf16.mxu0 0
    %204 = vmatpush1.bf16.msra.mxu0 0
    %205 = vmatprep.subr.bf16.mxu0 0
    %206 = vmatpush1.bf16.msra.mxu0 0
    %207 = vmatprep.subr.bf16.mxu0 0
    %208 = vmatpush1.bf16.msra.mxu0 0
    %209 = vmatprep.subr.bf16.mxu0 0
    %210 = vmatpush1.bf16.msra.mxu0 %v190
    %211 = vmatprep.subr.bf16.mxu0 0
    %212 = vmatpush1.bf16.msra.mxu0 %v189
    %213 = vmatprep.subr.bf16.mxu0 0
    %214 = vmatpush2.bf16.msra.mxu0 0
    %215 = vmatprep.subr.bf16.mxu0 0
    %216 = vmatpush2.bf16.msra.mxu0 0
    %217 = vmatprep.subr.bf16.mxu0 0
    %218 = vmatpush2.bf16.msra.mxu0 0
    %219 = vmatprep.subr.bf16.mxu0 0
    %220 = vmatpush2.bf16.msra.mxu0 0
    %221 = vmatprep.subr.bf16.mxu0 0
    %222 = vmatpush2.bf16.msra.mxu0 0
    %223 = vmatprep.subr.bf16.mxu0 0
    %224 = vmatpush2.bf16.msra.mxu0 0
    %225 = vmatprep.subr.bf16.mxu0 0
    %226 = vmatpush2.bf16.msra.mxu0 0
    %227 = vmatprep.subr.bf16.mxu0 0
    %228 = vmatpush2.bf16.msra.mxu0 0
    %229 = vmatprep.mubr.bf16.mxu0 0
    %230 = vmatmul.mubr.bf16.gmra.mxu0 %v195
    %v231 = vpop.f32.mrf.mxu0
    %v232 = vadd.f32 %v176, %v231
    %v233 = vpop.f32.mrf.mxu0
    %v234 = vpop.f32.mrf.mxu0
    %v235 = vpop.f32.mrf.mxu0
    %236 = vdwg.mxu0
    %v238 = vlaneseq
    %v239 = vshrl.u32 %v238, 7
    %v240 = vsub.s32 0, %v239
    %v241 = vrot.slane %v117, %v240
    %v243 = vadd.f32 %v232, %v241
    %vm244 = vcmp.gt.f32.partialorder %v243, 0.0
    %v245 = vmin.f32 %v243, 0.0
    %v246 = vmul.f32 %v245, 1.442695
    %v247 = vpow.pop %v246
    %v248 = vsub.f32 %v247, 1.0
    %v249 = vsel %vm244, %v243, %v248
    %v250 = vpack.c.bf16 %v249, %v249
    %v252 = vlaneseq
    %v253 = vshrl.u32 %v252, 7
    %v254 = vsub.s32 0, %v253
    %v255 = vrot.slane %v126, %v254
    %v261 = vunpack.c.l.b16 %v118
    %v262 = vunpack.c.l.b16 %v119
    %v263 = vunpack.c.l.b16 %v120
    %v264 = vunpack.c.l.b16 %v121
    %v265 = vpack.c.b16 %v262, %v261
    %v266 = vpack.c.b16 %v264, %v263
    %v270 = vsel %vm193, %v250, 0
    %272 = vmatprep.subr.bf16.mxu0 0
    %273 = vmatpush1.bf16.msra.mxu0 0
    %274 = vmatprep.subr.bf16.mxu0 0
    %275 = vmatpush1.bf16.msra.mxu0 0
    %276 = vmatprep.subr.bf16.mxu0 0
    %277 = vmatpush1.bf16.msra.mxu0 0
    %278 = vmatprep.subr.bf16.mxu0 0
    %279 = vmatpush1.bf16.msra.mxu0 0
    %280 = vmatprep.subr.bf16.mxu0 0
    %281 = vmatpush1.bf16.msra.mxu0 0
    %282 = vmatprep.subr.bf16.mxu0 0
    %283 = vmatpush1.bf16.msra.mxu0 0
    %284 = vmatprep.subr.bf16.mxu0 0
    %285 = vmatpush1.bf16.msra.mxu0 %v266
    %286 = vmatprep.subr.bf16.mxu0 0
    %287 = vmatpush1.bf16.msra.mxu0 %v265
    %288 = vmatprep.subr.bf16.mxu0 0
    %289 = vmatpush2.bf16.msra.mxu0 0
    %290 = vmatprep.subr.bf16.mxu0 0
    %291 = vmatpush2.bf16.msra.mxu0 0
    %292 = vmatprep.subr.bf16.mxu0 0
    %293 = vmatpush2.bf16.msra.mxu0 0
    %294 = vmatprep.subr.bf16.mxu0 0
    %295 = vmatpush2.bf16.msra.mxu0 0
    %296 = vmatprep.subr.bf16.mxu0 0
    %297 = vmatpush2.bf16.msra.mxu0 0
    %298 = vmatprep.subr.bf16.mxu0 0
    %299 = vmatpush2.bf16.msra.mxu0 0
    %300 = vmatprep.subr.bf16.mxu0 0
    %301 = vmatpush2.bf16.msra.mxu0 0
    %302 = vmatprep.subr.bf16.mxu0 0
    %303 = vmatpush2.bf16.msra.mxu0 0
    %304 = vmatprep.mubr.bf16.mxu0 0
    %305 = vmatmul.mubr.bf16.gmra.mxu0 %v270
    %v306 = vpop.f32.mrf.mxu0
    %v307 = vadd.f32 %v255, %v306
    %v308 = vpop.f32.mrf.mxu0
    %v309 = vpop.f32.mrf.mxu0
    %v310 = vpop.f32.mrf.mxu0
    %311 = vdwg.mxu0
    %v312 = vpack.c.bf16 %v128, %v128
    %v314 = vlaneseq
    %v315 = vshrl.u32 %v314, 7
    %v316 = vsub.s32 0, %v315
    %v317 = vrot.slane %v127, %v316
    %v323 = vunpack.c.l.b16 %v122
    %v324 = vunpack.c.l.b16 %v123
    %v325 = vunpack.c.l.b16 %v124
    %v326 = vunpack.c.l.b16 %v125
    %v327 = vpack.c.b16 %v324, %v323
    %v328 = vpack.c.b16 %v326, %v325
    %v332 = vsel %vm193, %v312, 0
    %334 = vmatprep.subr.bf16.mxu0 0
    %335 = vmatpush1.bf16.msra.mxu0 0
    %336 = vmatprep.subr.bf16.mxu0 0
    %337 = vmatpush1.bf16.msra.mxu0 0
    %338 = vmatprep.subr.bf16.mxu0 0
    %339 = vmatpush1.bf16.msra.mxu0 0
    %340 = vmatprep.subr.bf16.mxu0 0
    %341 = vmatpush1.bf16.msra.mxu0 0
    %342 = vmatprep.subr.bf16.mxu0 0
    %343 = vmatpush1.bf16.msra.mxu0 0
    %344 = vmatprep.subr.bf16.mxu0 0
    %345 = vmatpush1.bf16.msra.mxu0 0
    %346 = vmatprep.subr.bf16.mxu0 0
    %347 = vmatpush1.bf16.msra.mxu0 %v328
    %348 = vmatprep.subr.bf16.mxu0 0
    %349 = vmatpush1.bf16.msra.mxu0 %v327
    %350 = vmatprep.subr.bf16.mxu0 0
    %351 = vmatpush2.bf16.msra.mxu0 0
    %352 = vmatprep.subr.bf16.mxu0 0
    %353 = vmatpush2.bf16.msra.mxu0 0
    %354 = vmatprep.subr.bf16.mxu0 0
    %355 = vmatpush2.bf16.msra.mxu0 0
    %356 = vmatprep.subr.bf16.mxu0 0
    %357 = vmatpush2.bf16.msra.mxu0 0
    %358 = vmatprep.subr.bf16.mxu0 0
    %359 = vmatpush2.bf16.msra.mxu0 0
    %360 = vmatprep.subr.bf16.mxu0 0
    %361 = vmatpush2.bf16.msra.mxu0 0
    %362 = vmatprep.subr.bf16.mxu0 0
    %363 = vmatpush2.bf16.msra.mxu0 0
    %364 = vmatprep.subr.bf16.mxu0 0
    %365 = vmatpush2.bf16.msra.mxu0 0
    %366 = vmatprep.mubr.bf16.mxu0 0
    %367 = vmatmul.mubr.bf16.gmra.mxu0 %v332
    %v368 = vpop.f32.mrf.mxu0
    %v369 = vadd.f32 %v317, %v368
    %v370 = vpop.f32.mrf.mxu0
    %v371 = vpop.f32.mrf.mxu0
    %v372 = vpop.f32.mrf.mxu0
    %373 = vdwg.mxu0
    %v374 = vadd.f32 %v307, %v369
    %v375 = vxor.u32 %v374, 2147483648
    %v376 = vmul.f32 %v375, 1.442695
    %v377 = vpow.pop %v376
    %v378 = vadd.f32 %v377, 1.0
    %v379 = vrcp.pop %v378
    %v380 = vmul.f32 1.0, %v379
    %382 = vrot.lane.b32.xlu0 %v369, 64
    %v383 = vpop.permute.xlu0 %382
    %v385 = vmul.f32 %v380, %v383
    %387 = vrot.lane.b32.xlu0 %v385, 64
    %v388 = vpop.permute.xlu0 %387
    %v390 = vadd.f32 %v307, %v388
    %v391 = vtanh.pop %v390
    %393 = vrot.lane.b32.xlu0 %v391, 64
    %v394 = vpop.permute.xlu0 %393
    %v396 = vsub.f32 %v128, %v394
    %398 = vrot.lane.b32.xlu0 %v396, 32
    %v399 = vpop.permute.xlu0 %398
    %v401 = vmul.f32 %v380, %v399
    %403 = vrot.lane.b32.xlu0 %v401, 32
    %v404 = vpop.permute.xlu0 %403
    %v406 = vadd.f32 %v391, %v404
    %s407 = scalar_lea.vmem [#allocation3], 2
    %v408 = vld [vmem:[%s407] sm:$0x3]
    %s409 = scalar_lea.vmem [#allocation6], 2
    %v410 = vld [vmem:[%s409] sm:$0x3]
    %v411 = vpack.c.bf16 %v408, %v408
    %v412 = vpack.c.bf16 %v410, %v410
    %v414 = vsel %vm133, %v412, 0
    %416 = vmatprep.subr.bf16.mxu0 0
    %417 = vmatpush1.bf16.msra.mxu0 0
    %418 = vmatprep.subr.bf16.mxu0 0
    %419 = vmatpush1.bf16.msra.mxu0 0
    %420 = vmatprep.subr.bf16.mxu0 0
    %421 = vmatpush1.bf16.msra.mxu0 0
    %422 = vmatprep.subr.bf16.mxu0 0
    %423 = vmatpush1.bf16.msra.mxu0 0
    %424 = vmatprep.subr.bf16.mxu0 0
    %425 = vmatpush1.bf16.msra.mxu0 0
    %426 = vmatprep.subr.bf16.mxu0 0
    %427 = vmatpush1.bf16.msra.mxu0 0
    %428 = vmatprep.subr.bf16.mxu0 0
    %429 = vmatpush1.bf16.msra.mxu0 0
    %430 = vmatprep.subr.bf16.mxu0 0
    %431 = vmatpush1.bf16.msra.mxu0 %v139
    %432 = vmatprep.subr.bf16.mxu0 0
    %433 = vmatpush2.bf16.msra.mxu0 0
    %434 = vmatprep.subr.bf16.mxu0 0
    %435 = vmatpush2.bf16.msra.mxu0 0
    %436 = vmatprep.subr.bf16.mxu0 0
    %437 = vmatpush2.bf16.msra.mxu0 0
    %438 = vmatprep.subr.bf16.mxu0 0
    %439 = vmatpush2.bf16.msra.mxu0 0
    %440 = vmatprep.subr.bf16.mxu0 0
    %441 = vmatpush2.bf16.msra.mxu0 0
    %442 = vmatprep.subr.bf16.mxu0 0
    %443 = vmatpush2.bf16.msra.mxu0 0
    %444 = vmatprep.subr.bf16.mxu0 0
    %445 = vmatpush2.bf16.msra.mxu0 0
    %446 = vmatprep.subr.bf16.mxu0 0
    %447 = vmatpush2.bf16.msra.mxu0 0
    %448 = vmatprep.mubr.bf16.mxu0 0
    %449 = vmatmul.mubr.bf16.gmra.mxu0 %v414
    %v450 = vpop.f32.mrf.mxu0
    %v451 = vadd.f32 0.0, %v450
    %v452 = vpop.f32.mrf.mxu0
    %v453 = vpop.f32.mrf.mxu0
    %v454 = vpop.f32.mrf.mxu0
    %455 = vdwg.mxu0
    %v457 = vsel %vm193, %v411, 0
    %459 = vmatprep.subr.bf16.mxu0 0
    %460 = vmatpush1.bf16.msra.mxu0 0
    %461 = vmatprep.subr.bf16.mxu0 0
    %462 = vmatpush1.bf16.msra.mxu0 0
    %463 = vmatprep.subr.bf16.mxu0 0
    %464 = vmatpush1.bf16.msra.mxu0 0
    %465 = vmatprep.subr.bf16.mxu0 0
    %466 = vmatpush1.bf16.msra.mxu0 0
    %467 = vmatprep.subr.bf16.mxu0 0
    %468 = vmatpush1.bf16.msra.mxu0 0
    %469 = vmatprep.subr.bf16.mxu0 0
    %470 = vmatpush1.bf16.msra.mxu0 0
    %471 = vmatprep.subr.bf16.mxu0 0
    %472 = vmatpush1.bf16.msra.mxu0 %v190
    %473 = vmatprep.subr.bf16.mxu0 0
    %474 = vmatpush1.bf16.msra.mxu0 %v189
    %475 = vmatprep.subr.bf16.mxu0 0
    %476 = vmatpush2.bf16.msra.mxu0 0
    %477 = vmatprep.subr.bf16.mxu0 0
    %478 = vmatpush2.bf16.msra.mxu0 0
    %479 = vmatprep.subr.bf16.mxu0 0
    %480 = vmatpush2.bf16.msra.mxu0 0
    %481 = vmatprep.subr.bf16.mxu0 0
    %482 = vmatpush2.bf16.msra.mxu0 0
    %483 = vmatprep.subr.bf16.mxu0 0
    %484 = vmatpush2.bf16.msra.mxu0 0
    %485 = vmatprep.subr.bf16.mxu0 0
    %486 = vmatpush2.bf16.msra.mxu0 0
    %487 = vmatprep.subr.bf16.mxu0 0
    %488 = vmatpush2.bf16.msra.mxu0 0
    %489 = vmatprep.subr.bf16.mxu0 0
    %490 = vmatpush2.bf16.msra.mxu0 0
    %491 = vmatprep.mubr.bf16.mxu0 0
    %492 = vmatmul.mubr.bf16.gmra.mxu0 %v457
    %v493 = vpop.f32.mrf.mxu0
    %v494 = vadd.f32 %v451, %v493
    %v495 = vpop.f32.mrf.mxu0
    %v496 = vpop.f32.mrf.mxu0
    %v497 = vpop.f32.mrf.mxu0
    %498 = vdwg.mxu0
    %v499 = vadd.f32 %v494, %v241
    %vm500 = vcmp.gt.f32.partialorder %v499, 0.0
    %v501 = vmin.f32 %v499, 0.0
    %v502 = vmul.f32 %v501, 1.442695
    %v503 = vpow.pop %v502
    %v504 = vsub.f32 %v503, 1.0
    %v505 = vsel %vm500, %v499, %v504
    %v506 = vpack.c.bf16 %v505, %v505
    %v508 = vsel %vm193, %v506, 0
    %510 = vmatprep.subr.bf16.mxu0 0
    %511 = vmatpush1.bf16.msra.mxu0 0
    %512 = vmatprep.subr.bf16.mxu0 0
    %513 = vmatpush1.bf16.msra.mxu0 0
    %514 = vmatprep.subr.bf16.mxu0 0
    %515 = vmatpush1.bf16.msra.mxu0 0
    %516 = vmatprep.subr.bf16.mxu0 0
    %517 = vmatpush1.bf16.msra.mxu0 0
    %518 = vmatprep.subr.bf16.mxu0 0
    %519 = vmatpush1.bf16.msra.mxu0 0
    %520 = vmatprep.subr.bf16.mxu0 0
    %521 = vmatpush1.bf16.msra.mxu0 0
    %522 = vmatprep.subr.bf16.mxu0 0
    %523 = vmatpush1.bf16.msra.mxu0 %v266
    %524 = vmatprep.subr.bf16.mxu0 0
    %525 = vmatpush1.bf16.msra.mxu0 %v265
    %526 = vmatprep.subr.bf16.mxu0 0
    %527 = vmatpush2.bf16.msra.mxu0 0
    %528 = vmatprep.subr.bf16.mxu0 0
    %529 = vmatpush2.bf16.msra.mxu0 0
    %530 = vmatprep.subr.bf16.mxu0 0
    %531 = vmatpush2.bf16.msra.mxu0 0
    %532 = vmatprep.subr.bf16.mxu0 0
    %533 = vmatpush2.bf16.msra.mxu0 0
    %534 = vmatprep.subr.bf16.mxu0 0
    %535 = vmatpush2.bf16.msra.mxu0 0
    %536 = vmatprep.subr.bf16.mxu0 0
    %537 = vmatpush2.bf16.msra.mxu0 0
    %538 = vmatprep.subr.bf16.mxu0 0
    %539 = vmatpush2.bf16.msra.mxu0 0
    %540 = vmatprep.subr.bf16.mxu0 0
    %541 = vmatpush2.bf16.msra.mxu0 0
    %542 = vmatprep.mubr.bf16.mxu0 0
    %543 = vmatmul.mubr.bf16.gmra.mxu0 %v508
    %v544 = vpop.f32.mrf.mxu0
    %v545 = vadd.f32 %v255, %v544
    %v546 = vpop.f32.mrf.mxu0
    %v547 = vpop.f32.mrf.mxu0
    %v548 = vpop.f32.mrf.mxu0
    %549 = vdwg.mxu0
    %v550 = vpack.c.bf16 %v406, %v406
    %552 = vrot.lane.b32.xlu0 %v550, 64
    %v553 = vpop.permute.xlu0 %552
    %v555 = vsel %vm193, %v553, 0
    %557 = vmatprep.subr.bf16.mxu0 0
    %558 = vmatpush1.bf16.msra.mxu0 0
    %559 = vmatprep.subr.bf16.mxu0 0
    %560 = vmatpush1.bf16.msra.mxu0 0
    %561 = vmatprep.subr.bf16.mxu0 0
    %562 = vmatpush1.bf16.msra.mxu0 0
    %563 = vmatprep.subr.bf16.mxu0 0
    %564 = vmatpush1.bf16.msra.mxu0 0
    %565 = vmatprep.subr.bf16.mxu0 0
    %566 = vmatpush1.bf16.msra.mxu0 0
    %567 = vmatprep.subr.bf16.mxu0 0
    %568 = vmatpush1.bf16.msra.mxu0 0
    %569 = vmatprep.subr.bf16.mxu0 0
    %570 = vmatpush1.bf16.msra.mxu0 %v328
    %571 = vmatprep.subr.bf16.mxu0 0
    %572 = vmatpush1.bf16.msra.mxu0 %v327
    %573 = vmatprep.subr.bf16.mxu0 0
    %574 = vmatpush2.bf16.msra.mxu0 0
    %575 = vmatprep.subr.bf16.mxu0 0
    %576 = vmatpush2.bf16.msra.mxu0 0
    %577 = vmatprep.subr.bf16.mxu0 0
    %578 = vmatpush2.bf16.msra.mxu0 0
    %579 = vmatprep.subr.bf16.mxu0 0
    %580 = vmatpush2.bf16.msra.mxu0 0
    %581 = vmatprep.subr.bf16.mxu0 0
    %582 = vmatpush2.bf16.msra.mxu0 0
    %583 = vmatprep.subr.bf16.mxu0 0
    %584 = vmatpush2.bf16.msra.mxu0 0
    %585 = vmatprep.subr.bf16.mxu0 0
    %586 = vmatpush2.bf16.msra.mxu0 0
    %587 = vmatprep.subr.bf16.mxu0 0
    %588 = vmatpush2.bf16.msra.mxu0 0
    %589 = vmatprep.mubr.bf16.mxu0 0
    %590 = vmatmul.mubr.bf16.gmra.mxu0 %v555
    %v591 = vpop.f32.mrf.mxu0
    %v592 = vadd.f32 %v317, %v591
    %v593 = vpop.f32.mrf.mxu0
    %v594 = vpop.f32.mrf.mxu0
    %v595 = vpop.f32.mrf.mxu0
    %596 = vdwg.mxu0
    %v597 = vadd.f32 %v545, %v592
    %v598 = vxor.u32 %v597, 2147483648
    %v599 = vmul.f32 %v598, 1.442695
    %v600 = vpow.pop %v599
    %v601 = vadd.f32 %v600, 1.0
    %v602 = vrcp.pop %v601
    %v603 = vmul.f32 1.0, %v602
    %605 = vrot.lane.b32.xlu0 %v592, 64
    %v606 = vpop.permute.xlu0 %605
    %v608 = vmul.f32 %v603, %v606
    %610 = vrot.lane.b32.xlu0 %v608, 64
    %v611 = vpop.permute.xlu0 %610
    %v613 = vadd.f32 %v545, %v611
    %v614 = vtanh.pop %v613
    %v615 = vsub.f32 %v406, %v614
    %617 = vrot.lane.b32.xlu0 %v615, 96
    %v618 = vpop.permute.xlu0 %617
    %v620 = vmul.f32 %v603, %v618
    %622 = vrot.lane.b32.xlu0 %v620, 32
    %v623 = vpop.permute.xlu0 %622
    %v625 = vadd.f32 %v614, %v623
    %s626 = scalar_lea.vmem [#allocation3], 4
    %v627 = vld [vmem:[%s626] sm:$0x3]
    %s628 = scalar_lea.vmem [#allocation6], 4
    %v629 = vld [vmem:[%s628] sm:$0x3]
    %v630 = vpack.c.bf16 %v627, %v627
    %v631 = vpack.c.bf16 %v629, %v629
    %v633 = vsel %vm133, %v631, 0
    %635 = vmatprep.subr.bf16.mxu0 0
    %636 = vmatpush1.bf16.msra.mxu0 0
    %637 = vmatprep.subr.bf16.mxu0 0
    %638 = vmatpush1.bf16.msra.mxu0 0
    %639 = vmatprep.subr.bf16.mxu0 0
    %640 = vmatpush1.bf16.msra.mxu0 0
    %641 = vmatprep.subr.bf16.mxu0 0
    %642 = vmatpush1.bf16.msra.mxu0 0
    %643 = vmatprep.subr.bf16.mxu0 0
    %644 = vmatpush1.bf16.msra.mxu0 0
    %645 = vmatprep.subr.bf16.mxu0 0
    %646 = vmatpush1.bf16.msra.mxu0 0
    %647 = vmatprep.subr.bf16.mxu0 0
    %648 = vmatpush1.bf16.msra.mxu0 0
    %649 = vmatprep.subr.bf16.mxu0 0
    %650 = vmatpush1.bf16.msra.mxu0 %v139
    %651 = vmatprep.subr.bf16.mxu0 0
    %652 = vmatpush2.bf16.msra.mxu0 0
    %653 = vmatprep.subr.bf16.mxu0 0
    %654 = vmatpush2.bf16.msra.mxu0 0
    %655 = vmatprep.subr.bf16.mxu0 0
    %656 = vmatpush2.bf16.msra.mxu0 0
    %657 = vmatprep.subr.bf16.mxu0 0
    %658 = vmatpush2.bf16.msra.mxu0 0
    %659 = vmatprep.subr.bf16.mxu0 0
    %660 = vmatpush2.bf16.msra.mxu0 0
    %661 = vmatprep.subr.bf16.mxu0 0
    %662 = vmatpush2.bf16.msra.mxu0 0
    %663 = vmatprep.subr.bf16.mxu0 0
    %664 = vmatpush2.bf16.msra.mxu0 0
    %665 = vmatprep.subr.bf16.mxu0 0
    %666 = vmatpush2.bf16.msra.mxu0 0
    %667 = vmatprep.mubr.bf16.mxu0 0
    %668 = vmatmul.mubr.bf16.gmra.mxu0 %v633
    %v669 = vpop.f32.mrf.mxu0
    %v670 = vadd.f32 0.0, %v669
    %v671 = vpop.f32.mrf.mxu0
    %v672 = vpop.f32.mrf.mxu0
    %v673 = vpop.f32.mrf.mxu0
    %674 = vdwg.mxu0
    %v676 = vsel %vm193, %v630, 0
    %678 = vmatprep.subr.bf16.mxu0 0
    %679 = vmatpush1.bf16.msra.mxu0 0
    %680 = vmatprep.subr.bf16.mxu0 0
    %681 = vmatpush1.bf16.msra.mxu0 0
    %682 = vmatprep.subr.bf16.mxu0 0
    %683 = vmatpush1.bf16.msra.mxu0 0
    %684 = vmatprep.subr.bf16.mxu0 0
    %685 = vmatpush1.bf16.msra.mxu0 0
    %686 = vmatprep.subr.bf16.mxu0 0
    %687 = vmatpush1.bf16.msra.mxu0 0
    %688 = vmatprep.subr.bf16.mxu0 0
    %689 = vmatpush1.bf16.msra.mxu0 0
    %690 = vmatprep.subr.bf16.mxu0 0
    %691 = vmatpush1.bf16.msra.mxu0 %v190
    %692 = vmatprep.subr.bf16.mxu0 0
    %693 = vmatpush1.bf16.msra.mxu0 %v189
    %694 = vmatprep.subr.bf16.mxu0 0
    %695 = vmatpush2.bf16.msra.mxu0 0
    %696 = vmatprep.subr.bf16.mxu0 0
    %697 = vmatpush2.bf16.msra.mxu0 0
    %698 = vmatprep.subr.bf16.mxu0 0
    %699 = vmatpush2.bf16.msra.mxu0 0
    %700 = vmatprep.subr.bf16.mxu0 0
    %701 = vmatpush2.bf16.msra.mxu0 0
    %702 = vmatprep.subr.bf16.mxu0 0
    %703 = vmatpush2.bf16.msra.mxu0 0
    %704 = vmatprep.subr.bf16.mxu0 0
    %705 = vmatpush2.bf16.msra.mxu0 0
    %706 = vmatprep.subr.bf16.mxu0 0
    %707 = vmatpush2.bf16.msra.mxu0 0
    %708 = vmatprep.subr.bf16.mxu0 0
    %709 = vmatpush2.bf16.msra.mxu0 0
    %710 = vmatprep.mubr.bf16.mxu0 0
    %711 = vmatmul.mubr.bf16.gmra.mxu0 %v676
    %v712 = vpop.f32.mrf.mxu0
    %v713 = vadd.f32 %v670, %v712
    %v714 = vpop.f32.mrf.mxu0
    %v715 = vpop.f32.mrf.mxu0
    %v716 = vpop.f32.mrf.mxu0
    %717 = vdwg.mxu0
    %v718 = vadd.f32 %v713, %v241
    %vm719 = vcmp.gt.f32.partialorder %v718, 0.0
    %v720 = vmin.f32 %v718, 0.0
    %v721 = vmul.f32 %v720, 1.442695
    %v722 = vpow.pop %v721
    %v723 = vsub.f32 %v722, 1.0
    %v724 = vsel %vm719, %v718, %v723
    %v725 = vpack.c.bf16 %v724, %v724
    %v727 = vsel %vm193, %v725, 0
    %729 = vmatprep.subr.bf16.mxu0 0
    %730 = vmatpush1.bf16.msra.mxu0 0
    %731 = vmatprep.subr.bf16.mxu0 0
    %732 = vmatpush1.bf16.msra.mxu0 0
    %733 = vmatprep.subr.bf16.mxu0 0
    %734 = vmatpush1.bf16.msra.mxu0 0
    %735 = vmatprep.subr.bf16.mxu0 0
    %736 = vmatpush1.bf16.msra.mxu0 0
    %737 = vmatprep.subr.bf16.mxu0 0
    %738 = vmatpush1.bf16.msra.mxu0 0
    %739 = vmatprep.subr.bf16.mxu0 0
    %740 = vmatpush1.bf16.msra.mxu0 0
    %741 = vmatprep.subr.bf16.mxu0 0
    %742 = vmatpush1.bf16.msra.mxu0 %v266
    %743 = vmatprep.subr.bf16.mxu0 0
    %744 = vmatpush1.bf16.msra.mxu0 %v265
    %745 = vmatprep.subr.bf16.mxu0 0
    %746 = vmatpush2.bf16.msra.mxu0 0
    %747 = vmatprep.subr.bf16.mxu0 0
    %748 = vmatpush2.bf16.msra.mxu0 0
    %749 = vmatprep.subr.bf16.mxu0 0
    %750 = vmatpush2.bf16.msra.mxu0 0
    %751 = vmatprep.subr.bf16.mxu0 0
    %752 = vmatpush2.bf16.msra.mxu0 0
    %753 = vmatprep.subr.bf16.mxu0 0
    %754 = vmatpush2.bf16.msra.mxu0 0
    %755 = vmatprep.subr.bf16.mxu0 0
    %756 = vmatpush2.bf16.msra.mxu0 0
    %757 = vmatprep.subr.bf16.mxu0 0
    %758 = vmatpush2.bf16.msra.mxu0 0
    %759 = vmatprep.subr.bf16.mxu0 0
    %760 = vmatpush2.bf16.msra.mxu0 0
    %761 = vmatprep.mubr.bf16.mxu0 0
    %762 = vmatmul.mubr.bf16.gmra.mxu0 %v727
    %v763 = vpop.f32.mrf.mxu0
    %v764 = vadd.f32 %v255, %v763
    %v765 = vpop.f32.mrf.mxu0
    %v766 = vpop.f32.mrf.mxu0
    %v767 = vpop.f32.mrf.mxu0
    %768 = vdwg.mxu0
    %v769 = vpack.c.bf16 %v625, %v625
    %771 = vrot.lane.b32.xlu0 %v769, 64
    %v772 = vpop.permute.xlu0 %771
    %v774 = vsel %vm193, %v772, 0
    %776 = vmatprep.subr.bf16.mxu0 0
    %777 = vmatpush1.bf16.msra.mxu0 0
    %778 = vmatprep.subr.bf16.mxu0 0
    %779 = vmatpush1.bf16.msra.mxu0 0
    %780 = vmatprep.subr.bf16.mxu0 0
    %781 = vmatpush1.bf16.msra.mxu0 0
    %782 = vmatprep.subr.bf16.mxu0 0
    %783 = vmatpush1.bf16.msra.mxu0 0
    %784 = vmatprep.subr.bf16.mxu0 0
    %785 = vmatpush1.bf16.msra.mxu0 0
    %786 = vmatprep.subr.bf16.mxu0 0
    %787 = vmatpush1.bf16.msra.mxu0 0
    %788 = vmatprep.subr.bf16.mxu0 0
    %789 = vmatpush1.bf16.msra.mxu0 %v328
    %790 = vmatprep.subr.bf16.mxu0 0
    %791 = vmatpush1.bf16.msra.mxu0 %v327
    %792 = vmatprep.subr.bf16.mxu0 0
    %793 = vmatpush2.bf16.msra.mxu0 0
    %794 = vmatprep.subr.bf16.mxu0 0
    %795 = vmatpush2.bf16.msra.mxu0 0
    %796 = vmatprep.subr.bf16.mxu0 0
    %797 = vmatpush2.bf16.msra.mxu0 0
    %798 = vmatprep.subr.bf16.mxu0 0
    %799 = vmatpush2.bf16.msra.mxu0 0
    %800 = vmatprep.subr.bf16.mxu0 0
    %801 = vmatpush2.bf16.msra.mxu0 0
    %802 = vmatprep.subr.bf16.mxu0 0
    %803 = vmatpush2.bf16.msra.mxu0 0
    %804 = vmatprep.subr.bf16.mxu0 0
    %805 = vmatpush2.bf16.msra.mxu0 0
    %806 = vmatprep.subr.bf16.mxu0 0
    %807 = vmatpush2.bf16.msra.mxu0 0
    %808 = vmatprep.mubr.bf16.mxu0 0
    %809 = vmatmul.mubr.bf16.gmra.mxu0 %v774
    %v810 = vpop.f32.mrf.mxu0
    %v811 = vadd.f32 %v317, %v810
    %v812 = vpop.f32.mrf.mxu0
    %v813 = vpop.f32.mrf.mxu0
    %v814 = vpop.f32.mrf.mxu0
    %815 = vdwg.mxu0
    %v816 = vadd.f32 %v764, %v811
    %v817 = vxor.u32 %v816, 2147483648
    %v818 = vmul.f32 %v817, 1.442695
    %v819 = vpow.pop %v818
    %v820 = vadd.f32 %v819, 1.0
    %v821 = vrcp.pop %v820
    %v822 = vmul.f32 1.0, %v821
    %824 = vrot.lane.b32.xlu0 %v811, 64
    %v825 = vpop.permute.xlu0 %824
    %v827 = vmul.f32 %v822, %v825
    %829 = vrot.lane.b32.xlu0 %v827, 64
    %v830 = vpop.permute.xlu0 %829
    %v832 = vadd.f32 %v764, %v830
    %v833 = vtanh.pop %v832
    %v834 = vsub.f32 %v625, %v833
    %836 = vrot.lane.b32.xlu0 %v834, 96
    %v837 = vpop.permute.xlu0 %836
    %v839 = vmul.f32 %v822, %v837
    %841 = vrot.lane.b32.xlu0 %v839, 32
    %v842 = vpop.permute.xlu0 %841
    %v844 = vadd.f32 %v833, %v842
    %s845 = scalar_lea.vmem [#allocation3], 6
    %v846 = vld [vmem:[%s845] sm:$0x3]
    %s847 = scalar_lea.vmem [#allocation6], 6
    %v848 = vld [vmem:[%s847] sm:$0x3]
    %v849 = vpack.c.bf16 %v846, %v846
    %v850 = vpack.c.bf16 %v848, %v848
    %v852 = vsel %vm133, %v850, 0
    %854 = vmatprep.subr.bf16.mxu0 0
    %855 = vmatpush1.bf16.msra.mxu0 0
    %856 = vmatprep.subr.bf16.mxu0 0
    %857 = vmatpush1.bf16.msra.mxu0 0
    %858 = vmatprep.subr.bf16.mxu0 0
    %859 = vmatpush1.bf16.msra.mxu0 0
    %860 = vmatprep.subr.bf16.mxu0 0
    %861 = vmatpush1.bf16.msra.mxu0 0
    %862 = vmatprep.subr.bf16.mxu0 0
    %863 = vmatpush1.bf16.msra.mxu0 0
    %864 = vmatprep.subr.bf16.mxu0 0
    %865 = vmatpush1.bf16.msra.mxu0 0
    %866 = vmatprep.subr.bf16.mxu0 0
    %867 = vmatpush1.bf16.msra.mxu0 0
    %868 = vmatprep.subr.bf16.mxu0 0
    %869 = vmatpush1.bf16.msra.mxu0 %v139
    %870 = vmatprep.subr.bf16.mxu0 0
    %871 = vmatpush2.bf16.msra.mxu0 0
    %872 = vmatprep.subr.bf16.mxu0 0
    %873 = vmatpush2.bf16.msra.mxu0 0
    %874 = vmatprep.subr.bf16.mxu0 0
    %875 = vmatpush2.bf16.msra.mxu0 0
    %876 = vmatprep.subr.bf16.mxu0 0
    %877 = vmatpush2.bf16.msra.mxu0 0
    %878 = vmatprep.subr.bf16.mxu0 0
    %879 = vmatpush2.bf16.msra.mxu0 0
    %880 = vmatprep.subr.bf16.mxu0 0
    %881 = vmatpush2.bf16.msra.mxu0 0
    %882 = vmatprep.subr.bf16.mxu0 0
    %883 = vmatpush2.bf16.msra.mxu0 0
    %884 = vmatprep.subr.bf16.mxu0 0
    %885 = vmatpush2.bf16.msra.mxu0 0
    %886 = vmatprep.mubr.bf16.mxu0 0
    %887 = vmatmul.mubr.bf16.gmra.mxu0 %v852
    %v888 = vpop.f32.mrf.mxu0
    %v889 = vadd.f32 0.0, %v888
    %v890 = vpop.f32.mrf.mxu0
    %v891 = vpop.f32.mrf.mxu0
    %v892 = vpop.f32.mrf.mxu0
    %893 = vdwg.mxu0
    %v895 = vsel %vm193, %v849, 0
    %897 = vmatprep.subr.bf16.mxu0 0
    %898 = vmatpush1.bf16.msra.mxu0 0
    %899 = vmatprep.subr.bf16.mxu0 0
    %900 = vmatpush1.bf16.msra.mxu0 0
    %901 = vmatprep.subr.bf16.mxu0 0
    %902 = vmatpush1.bf16.msra.mxu0 0
    %903 = vmatprep.subr.bf16.mxu0 0
    %904 = vmatpush1.bf16.msra.mxu0 0
    %905 = vmatprep.subr.bf16.mxu0 0
    %906 = vmatpush1.bf16.msra.mxu0 0
    %907 = vmatprep.subr.bf16.mxu0 0
    %908 = vmatpush1.bf16.msra.mxu0 0
    %909 = vmatprep.subr.bf16.mxu0 0
    %910 = vmatpush1.bf16.msra.mxu0 %v190
    %911 = vmatprep.subr.bf16.mxu0 0
    %912 = vmatpush1.bf16.msra.mxu0 %v189
    %913 = vmatprep.subr.bf16.mxu0 0
    %914 = vmatpush2.bf16.msra.mxu0 0
    %915 = vmatprep.subr.bf16.mxu0 0
    %916 = vmatpush2.bf16.msra.mxu0 0
    %917 = vmatprep.subr.bf16.mxu0 0
    %918 = vmatpush2.bf16.msra.mxu0 0
    %919 = vmatprep.subr.bf16.mxu0 0
    %920 = vmatpush2.bf16.msra.mxu0 0
    %921 = vmatprep.subr.bf16.mxu0 0
    %922 = vmatpush2.bf16.msra.mxu0 0
    %923 = vmatprep.subr.bf16.mxu0 0
    %924 = vmatpush2.bf16.msra.mxu0 0
    %925 = vmatprep.subr.bf16.mxu0 0
    %926 = vmatpush2.bf16.msra.mxu0 0
    %927 = vmatprep.subr.bf16.mxu0 0
    %928 = vmatpush2.bf16.msra.mxu0 0
    %929 = vmatprep.mubr.bf16.mxu0 0
    %930 = vmatmul.mubr.bf16.gmra.mxu0 %v895
    %v931 = vpop.f32.mrf.mxu0
    %v932 = vadd.f32 %v889, %v931
    %v933 = vpop.f32.mrf.mxu0
    %v934 = vpop.f32.mrf.mxu0
    %v935 = vpop.f32.mrf.mxu0
    %936 = vdwg.mxu0
    %v937 = vadd.f32 %v932, %v241
    %vm938 = vcmp.gt.f32.partialorder %v937, 0.0
    %v939 = vmin.f32 %v937, 0.0
    %v940 = vmul.f32 %v939, 1.442695
    %v941 = vpow.pop %v940
    %v942 = vsub.f32 %v941, 1.0
    %v943 = vsel %vm938, %v937, %v942
    %v944 = vpack.c.bf16 %v943, %v943
    %v946 = vsel %vm193, %v944, 0
    %948 = vmatprep.subr.bf16.mxu0 0
    %949 = vmatpush1.bf16.msra.mxu0 0
    %950 = vmatprep.subr.bf16.mxu0 0
    %951 = vmatpush1.bf16.msra.mxu0 0
    %952 = vmatprep.subr.bf16.mxu0 0
    %953 = vmatpush1.bf16.msra.mxu0 0
    %954 = vmatprep.subr.bf16.mxu0 0
    %955 = vmatpush1.bf16.msra.mxu0 0
    %956 = vmatprep.subr.bf16.mxu0 0
    %957 = vmatpush1.bf16.msra.mxu0 0
    %958 = vmatprep.subr.bf16.mxu0 0
    %959 = vmatpush1.bf16.msra.mxu0 0
    %960 = vmatprep.subr.bf16.mxu0 0
    %961 = vmatpush1.bf16.msra.mxu0 %v266
    %962 = vmatprep.subr.bf16.mxu0 0
    %963 = vmatpush1.bf16.msra.mxu0 %v265
    %964 = vmatprep.subr.bf16.mxu0 0
    %965 = vmatpush2.bf16.msra.mxu0 0
    %966 = vmatprep.subr.bf16.mxu0 0
    %967 = vmatpush2.bf16.msra.mxu0 0
    %968 = vmatprep.subr.bf16.mxu0 0
    %969 = vmatpush2.bf16.msra.mxu0 0
    %970 = vmatprep.subr.bf16.mxu0 0
    %971 = vmatpush2.bf16.msra.mxu0 0
    %972 = vmatprep.subr.bf16.mxu0 0
    %973 = vmatpush2.bf16.msra.mxu0 0
    %974 = vmatprep.subr.bf16.mxu0 0
    %975 = vmatpush2.bf16.msra.mxu0 0
    %976 = vmatprep.subr.bf16.mxu0 0
    %977 = vmatpush2.bf16.msra.mxu0 0
    %978 = vmatprep.subr.bf16.mxu0 0
    %979 = vmatpush2.bf16.msra.mxu0 0
    %980 = vmatprep.mubr.bf16.mxu0 0
    %981 = vmatmul.mubr.bf16.gmra.mxu0 %v946
    %v982 = vpop.f32.mrf.mxu0
    %v983 = vadd.f32 %v255, %v982
    %v984 = vpop.f32.mrf.mxu0
    %v985 = vpop.f32.mrf.mxu0
    %v986 = vpop.f32.mrf.mxu0
    %987 = vdwg.mxu0
    %v988 = vpack.c.bf16 %v844, %v844
    %990 = vrot.lane.b32.xlu0 %v988, 64
    %v991 = vpop.permute.xlu0 %990
    %v993 = vsel %vm193, %v991, 0
    %995 = vmatprep.subr.bf16.mxu0 0
    %996 = vmatpush1.bf16.msra.mxu0 0
    %997 = vmatprep.subr.bf16.mxu0 0
    %998 = vmatpush1.bf16.msra.mxu0 0
    %999 = vmatprep.subr.bf16.mxu0 0
    %1000 = vmatpush1.bf16.msra.mxu0 0
    %1001 = vmatprep.subr.bf16.mxu0 0
    %1002 = vmatpush1.bf16.msra.mxu0 0
    %1003 = vmatprep.subr.bf16.mxu0 0
    %1004 = vmatpush1.bf16.msra.mxu0 0
    %1005 = vmatprep.subr.bf16.mxu0 0
    %1006 = vmatpush1.bf16.msra.mxu0 0
    %1007 = vmatprep.subr.bf16.mxu0 0
    %1008 = vmatpush1.bf16.msra.mxu0 %v328
    %1009 = vmatprep.subr.bf16.mxu0 0
    %1010 = vmatpush1.bf16.msra.mxu0 %v327
    %1011 = vmatprep.subr.bf16.mxu0 0
    %1012 = vmatpush2.bf16.msra.mxu0 0
    %1013 = vmatprep.subr.bf16.mxu0 0
    %1014 = vmatpush2.bf16.msra.mxu0 0
    %1015 = vmatprep.subr.bf16.mxu0 0
    %1016 = vmatpush2.bf16.msra.mxu0 0
    %1017 = vmatprep.subr.bf16.mxu0 0
    %1018 = vmatpush2.bf16.msra.mxu0 0
    %1019 = vmatprep.subr.bf16.mxu0 0
    %1020 = vmatpush2.bf16.msra.mxu0 0
    %1021 = vmatprep.subr.bf16.mxu0 0
    %1022 = vmatpush2.bf16.msra.mxu0 0
    %1023 = vmatprep.subr.bf16.mxu0 0
    %1024 = vmatpush2.bf16.msra.mxu0 0
    %1025 = vmatprep.subr.bf16.mxu0 0
    %1026 = vmatpush2.bf16.msra.mxu0 0
    %1027 = vmatprep.mubr.bf16.mxu0 0
    %1028 = vmatmul.mubr.bf16.gmra.mxu0 %v993
    %v1029 = vpop.f32.mrf.mxu0
    %v1030 = vadd.f32 %v317, %v1029
    %v1031 = vpop.f32.mrf.mxu0
    %v1032 = vpop.f32.mrf.mxu0
    %v1033 = vpop.f32.mrf.mxu0
    %1034 = vdwg.mxu0
    %v1035 = vadd.f32 %v983, %v1030
    %v1036 = vxor.u32 %v1035, 2147483648
    %v1037 = vmul.f32 %v1036, 1.442695
    %v1038 = vpow.pop %v1037
    %v1039 = vadd.f32 %v1038, 1.0
    %v1040 = vrcp.pop %v1039
    %v1041 = vmul.f32 1.0, %v1040
    %1043 = vrot.lane.b32.xlu0 %v1030, 64
    %v1044 = vpop.permute.xlu0 %1043
    %v1046 = vmul.f32 %v1041, %v1044
    %1048 = vrot.lane.b32.xlu0 %v1046, 64
    %v1049 = vpop.permute.xlu0 %1048
    %v1051 = vadd.f32 %v983, %v1049
    %v1052 = vtanh.pop %v1051
    %v1053 = vsub.f32 %v844, %v1052
    %1055 = vrot.lane.b32.xlu0 %v1053, 96
    %v1056 = vpop.permute.xlu0 %1055
    %v1058 = vmul.f32 %v1041, %v1056
    %1060 = vrot.lane.b32.xlu0 %v1058, 32
    %v1061 = vpop.permute.xlu0 %1060
    %v1063 = vadd.f32 %v1052, %v1061
    %s1064 = scalar_lea.vmem [#allocation3], 8
    %v1065 = vld [vmem:[%s1064] sm:$0x3]
    %s1066 = scalar_lea.vmem [#allocation6], 8
    %v1067 = vld [vmem:[%s1066] sm:$0x3]
    %v1068 = vpack.c.bf16 %v1065, %v1065
    %v1069 = vpack.c.bf16 %v1067, %v1067
    %v1071 = vsel %vm133, %v1069, 0
    %1073 = vmatprep.subr.bf16.mxu0 0
    %1074 = vmatpush1.bf16.msra.mxu0 0
    %1075 = vmatprep.subr.bf16.mxu0 0
    %1076 = vmatpush1.bf16.msra.mxu0 0
    %1077 = vmatprep.subr.bf16.mxu0 0
    %1078 = vmatpush1.bf16.msra.mxu0 0
    %1079 = vmatprep.subr.bf16.mxu0 0
    %1080 = vmatpush1.bf16.msra.mxu0 0
    %1081 = vmatprep.subr.bf16.mxu0 0
    %1082 = vmatpush1.bf16.msra.mxu0 0
    %1083 = vmatprep.subr.bf16.mxu0 0
    %1084 = vmatpush1.bf16.msra.mxu0 0
    %1085 = vmatprep.subr.bf16.mxu0 0
    %1086 = vmatpush1.bf16.msra.mxu0 0
    %1087 = vmatprep.subr.bf16.mxu0 0
    %1088 = vmatpush1.bf16.msra.mxu0 %v139
    %1089 = vmatprep.subr.bf16.mxu0 0
    %1090 = vmatpush2.bf16.msra.mxu0 0
    %1091 = vmatprep.subr.bf16.mxu0 0
    %1092 = vmatpush2.bf16.msra.mxu0 0
    %1093 = vmatprep.subr.bf16.mxu0 0
    %1094 = vmatpush2.bf16.msra.mxu0 0
    %1095 = vmatprep.subr.bf16.mxu0 0
    %1096 = vmatpush2.bf16.msra.mxu0 0
    %1097 = vmatprep.subr.bf16.mxu0 0
    %1098 = vmatpush2.bf16.msra.mxu0 0
    %1099 = vmatprep.subr.bf16.mxu0 0
    %1100 = vmatpush2.bf16.msra.mxu0 0
    %1101 = vmatprep.subr.bf16.mxu0 0
    %1102 = vmatpush2.bf16.msra.mxu0 0
    %1103 = vmatprep.subr.bf16.mxu0 0
    %1104 = vmatpush2.bf16.msra.mxu0 0
    %1105 = vmatprep.mubr.bf16.mxu0 0
    %1106 = vmatmul.mubr.bf16.gmra.mxu0 %v1071
    %v1107 = vpop.f32.mrf.mxu0
    %v1108 = vadd.f32 0.0, %v1107
    %v1109 = vpop.f32.mrf.mxu0
    %v1110 = vpop.f32.mrf.mxu0
    %v1111 = vpop.f32.mrf.mxu0
    %1112 = vdwg.mxu0
    %v1114 = vsel %vm193, %v1068, 0
    %1116 = vmatprep.subr.bf16.mxu0 0
    %1117 = vmatpush1.bf16.msra.mxu0 0
    %1118 = vmatprep.subr.bf16.mxu0 0
    %1119 = vmatpush1.bf16.msra.mxu0 0
    %1120 = vmatprep.subr.bf16.mxu0 0
    %1121 = vmatpush1.bf16.msra.mxu0 0
    %1122 = vmatprep.subr.bf16.mxu0 0
    %1123 = vmatpush1.bf16.msra.mxu0 0
    %1124 = vmatprep.subr.bf16.mxu0 0
    %1125 = vmatpush1.bf16.msra.mxu0 0
    %1126 = vmatprep.subr.bf16.mxu0 0
    %1127 = vmatpush1.bf16.msra.mxu0 0
    %1128 = vmatprep.subr.bf16.mxu0 0
    %1129 = vmatpush1.bf16.msra.mxu0 %v190
    %1130 = vmatprep.subr.bf16.mxu0 0
    %1131 = vmatpush1.bf16.msra.mxu0 %v189
    %1132 = vmatprep.subr.bf16.mxu0 0
    %1133 = vmatpush2.bf16.msra.mxu0 0
    %1134 = vmatprep.subr.bf16.mxu0 0
    %1135 = vmatpush2.bf16.msra.mxu0 0
    %1136 = vmatprep.subr.bf16.mxu0 0
    %1137 = vmatpush2.bf16.msra.mxu0 0
    %1138 = vmatprep.subr.bf16.mxu0 0
    %1139 = vmatpush2.bf16.msra.mxu0 0
    %1140 = vmatprep.subr.bf16.mxu0 0
    %1141 = vmatpush2.bf16.msra.mxu0 0
    %1142 = vmatprep.subr.bf16.mxu0 0
    %1143 = vmatpush2.bf16.msra.mxu0 0
    %1144 = vmatprep.subr.bf16.mxu0 0
    %1145 = vmatpush2.bf16.msra.mxu0 0
    %1146 = vmatprep.subr.bf16.mxu0 0
    %1147 = vmatpush2.bf16.msra.mxu0 0
    %1148 = vmatprep.mubr.bf16.mxu0 0
    %1149 = vmatmul.mubr.bf16.gmra.mxu0 %v1114
    %v1150 = vpop.f32.mrf.mxu0
    %v1151 = vadd.f32 %v1108, %v1150
    %v1152 = vpop.f32.mrf.mxu0
    %v1153 = vpop.f32.mrf.mxu0
    %v1154 = vpop.f32.mrf.mxu0
    %1155 = vdwg.mxu0
    %v1156 = vadd.f32 %v1151, %v241
    %vm1157 = vcmp.gt.f32.partialorder %v1156, 0.0
    %v1158 = vmin.f32 %v1156, 0.0
    %v1159 = vmul.f32 %v1158, 1.442695
    %v1160 = vpow.pop %v1159
    %v1161 = vsub.f32 %v1160, 1.0
    %v1162 = vsel %vm1157, %v1156, %v1161
    %v1163 = vpack.c.bf16 %v1162, %v1162
    %v1165 = vsel %vm193, %v1163, 0
    %1167 = vmatprep.subr.bf16.mxu0 0
    %1168 = vmatpush1.bf16.msra.mxu0 0
    %1169 = vmatprep.subr.bf16.mxu0 0
    %1170 = vmatpush1.bf16.msra.mxu0 0
    %1171 = vmatprep.subr.bf16.mxu0 0
    %1172 = vmatpush1.bf16.msra.mxu0 0
    %1173 = vmatprep.subr.bf16.mxu0 0
    %1174 = vmatpush1.bf16.msra.mxu0 0
    %1175 = vmatprep.subr.bf16.mxu0 0
    %1176 = vmatpush1.bf16.msra.mxu0 0
    %1177 = vmatprep.subr.bf16.mxu0 0
    %1178 = vmatpush1.bf16.msra.mxu0 0
    %1179 = vmatprep.subr.bf16.mxu0 0
    %1180 = vmatpush1.bf16.msra.mxu0 %v266
    %1181 = vmatprep.subr.bf16.mxu0 0
    %1182 = vmatpush1.bf16.msra.mxu0 %v265
    %1183 = vmatprep.subr.bf16.mxu0 0
    %1184 = vmatpush2.bf16.msra.mxu0 0
    %1185 = vmatprep.subr.bf16.mxu0 0
    %1186 = vmatpush2.bf16.msra.mxu0 0
    %1187 = vmatprep.subr.bf16.mxu0 0
    %1188 = vmatpush2.bf16.msra.mxu0 0
    %1189 = vmatprep.subr.bf16.mxu0 0
    %1190 = vmatpush2.bf16.msra.mxu0 0
    %1191 = vmatprep.subr.bf16.mxu0 0
    %1192 = vmatpush2.bf16.msra.mxu0 0
    %1193 = vmatprep.subr.bf16.mxu0 0
    %1194 = vmatpush2.bf16.msra.mxu0 0
    %1195 = vmatprep.subr.bf16.mxu0 0
    %1196 = vmatpush2.bf16.msra.mxu0 0
    %1197 = vmatprep.subr.bf16.mxu0 0
    %1198 = vmatpush2.bf16.msra.mxu0 0
    %1199 = vmatprep.mubr.bf16.mxu0 0
    %1200 = vmatmul.mubr.bf16.gmra.mxu0 %v1165
    %v1201 = vpop.f32.mrf.mxu0
    %v1202 = vadd.f32 %v255, %v1201
    %v1203 = vpop.f32.mrf.mxu0
    %v1204 = vpop.f32.mrf.mxu0
    %v1205 = vpop.f32.mrf.mxu0
    %1206 = vdwg.mxu0
    %v1207 = vpack.c.bf16 %v1063, %v1063
    %1209 = vrot.lane.b32.xlu0 %v1207, 64
    %v1210 = vpop.permute.xlu0 %1209
    %v1212 = vsel %vm193, %v1210, 0
    %1214 = vmatprep.subr.bf16.mxu0 0
    %1215 = vmatpush1.bf16.msra.mxu0 0
    %1216 = vmatprep.subr.bf16.mxu0 0
    %1217 = vmatpush1.bf16.msra.mxu0 0
    %1218 = vmatprep.subr.bf16.mxu0 0
    %1219 = vmatpush1.bf16.msra.mxu0 0
    %1220 = vmatprep.subr.bf16.mxu0 0
    %1221 = vmatpush1.bf16.msra.mxu0 0
    %1222 = vmatprep.subr.bf16.mxu0 0
    %1223 = vmatpush1.bf16.msra.mxu0 0
    %1224 = vmatprep.subr.bf16.mxu0 0
    %1225 = vmatpush1.bf16.msra.mxu0 0
    %1226 = vmatprep.subr.bf16.mxu0 0
    %1227 = vmatpush1.bf16.msra.mxu0 %v328
    %1228 = vmatprep.subr.bf16.mxu0 0
    %1229 = vmatpush1.bf16.msra.mxu0 %v327
    %1230 = vmatprep.subr.bf16.mxu0 0
    %1231 = vmatpush2.bf16.msra.mxu0 0
    %1232 = vmatprep.subr.bf16.mxu0 0
    %1233 = vmatpush2.bf16.msra.mxu0 0
    %1234 = vmatprep.subr.bf16.mxu0 0
    %1235 = vmatpush2.bf16.msra.mxu0 0
    %1236 = vmatprep.subr.bf16.mxu0 0
    %1237 = vmatpush2.bf16.msra.mxu0 0
    %1238 = vmatprep.subr.bf16.mxu0 0
    %1239 = vmatpush2.bf16.msra.mxu0 0
    %1240 = vmatprep.subr.bf16.mxu0 0
    %1241 = vmatpush2.bf16.msra.mxu0 0
    %1242 = vmatprep.subr.bf16.mxu0 0
    %1243 = vmatpush2.bf16.msra.mxu0 0
    %1244 = vmatprep.subr.bf16.mxu0 0
    %1245 = vmatpush2.bf16.msra.mxu0 0
    %1246 = vmatprep.mubr.bf16.mxu0 0
    %1247 = vmatmul.mubr.bf16.gmra.mxu0 %v1212
    %v1248 = vpop.f32.mrf.mxu0
    %v1249 = vadd.f32 %v317, %v1248
    %v1250 = vpop.f32.mrf.mxu0
    %v1251 = vpop.f32.mrf.mxu0
    %v1252 = vpop.f32.mrf.mxu0
    %1253 = vdwg.mxu0
    %v1254 = vadd.f32 %v1202, %v1249
    %v1255 = vxor.u32 %v1254, 2147483648
    %v1256 = vmul.f32 %v1255, 1.442695
    %v1257 = vpow.pop %v1256
    %v1258 = vadd.f32 %v1257, 1.0
    %v1259 = vrcp.pop %v1258
    %v1260 = vmul.f32 1.0, %v1259
    %1262 = vrot.lane.b32.xlu0 %v1249, 64
    %v1263 = vpop.permute.xlu0 %1262
    %v1265 = vmul.f32 %v1260, %v1263
    %1267 = vrot.lane.b32.xlu0 %v1265, 64
    %v1268 = vpop.permute.xlu0 %1267
    %v1270 = vadd.f32 %v1202, %v1268
    %v1271 = vtanh.pop %v1270
    %v1272 = vsub.f32 %v1063, %v1271
    %1274 = vrot.lane.b32.xlu0 %v1272, 96
    %v1275 = vpop.permute.xlu0 %1274
    %v1277 = vmul.f32 %v1260, %v1275
    %1279 = vrot.lane.b32.xlu0 %v1277, 32
    %v1280 = vpop.permute.xlu0 %1279
    %v1282 = vadd.f32 %v1271, %v1280
    %s1283 = scalar_lea.vmem [#allocation3], 10
    %v1284 = vld [vmem:[%s1283] sm:$0x3]
    %s1285 = scalar_lea.vmem [#allocation6], 10
    %v1286 = vld [vmem:[%s1285] sm:$0x3]
    %v1287 = vpack.c.bf16 %v1284, %v1284
    %v1288 = vpack.c.bf16 %v1286, %v1286
    %v1290 = vsel %vm133, %v1288, 0
    %1292 = vmatprep.subr.bf16.mxu0 0
    %1293 = vmatpush1.bf16.msra.mxu0 0
    %1294 = vmatprep.subr.bf16.mxu0 0
    %1295 = vmatpush1.bf16.msra.mxu0 0
    %1296 = vmatprep.subr.bf16.mxu0 0
    %1297 = vmatpush1.bf16.msra.mxu0 0
    %1298 = vmatprep.subr.bf16.mxu0 0
    %1299 = vmatpush1.bf16.msra.mxu0 0
    %1300 = vmatprep.subr.bf16.mxu0 0
    %1301 = vmatpush1.bf16.msra.mxu0 0
    %1302 = vmatprep.subr.bf16.mxu0 0
    %1303 = vmatpush1.bf16.msra.mxu0 0
    %1304 = vmatprep.subr.bf16.mxu0 0
    %1305 = vmatpush1.bf16.msra.mxu0 0
    %1306 = vmatprep.subr.bf16.mxu0 0
    %1307 = vmatpush1.bf16.msra.mxu0 %v139
    %1308 = vmatprep.subr.bf16.mxu0 0
    %1309 = vmatpush2.bf16.msra.mxu0 0
    %1310 = vmatprep.subr.bf16.mxu0 0
    %1311 = vmatpush2.bf16.msra.mxu0 0
    %1312 = vmatprep.subr.bf16.mxu0 0
    %1313 = vmatpush2.bf16.msra.mxu0 0
    %1314 = vmatprep.subr.bf16.mxu0 0
    %1315 = vmatpush2.bf16.msra.mxu0 0
    %1316 = vmatprep.subr.bf16.mxu0 0
    %1317 = vmatpush2.bf16.msra.mxu0 0
    %1318 = vmatprep.subr.bf16.mxu0 0
    %1319 = vmatpush2.bf16.msra.mxu0 0
    %1320 = vmatprep.subr.bf16.mxu0 0
    %1321 = vmatpush2.bf16.msra.mxu0 0
    %1322 = vmatprep.subr.bf16.mxu0 0
    %1323 = vmatpush2.bf16.msra.mxu0 0
    %1324 = vmatprep.mubr.bf16.mxu0 0
    %1325 = vmatmul.mubr.bf16.gmra.mxu0 %v1290
    %v1326 = vpop.f32.mrf.mxu0
    %v1327 = vadd.f32 0.0, %v1326
    %v1328 = vpop.f32.mrf.mxu0
    %v1329 = vpop.f32.mrf.mxu0
    %v1330 = vpop.f32.mrf.mxu0
    %1331 = vdwg.mxu0
    %v1333 = vsel %vm193, %v1287, 0
    %1335 = vmatprep.subr.bf16.mxu0 0
    %1336 = vmatpush1.bf16.msra.mxu0 0
    %1337 = vmatprep.subr.bf16.mxu0 0
    %1338 = vmatpush1.bf16.msra.mxu0 0
    %1339 = vmatprep.subr.bf16.mxu0 0
    %1340 = vmatpush1.bf16.msra.mxu0 0
    %1341 = vmatprep.subr.bf16.mxu0 0
    %1342 = vmatpush1.bf16.msra.mxu0 0
    %1343 = vmatprep.subr.bf16.mxu0 0
    %1344 = vmatpush1.bf16.msra.mxu0 0
    %1345 = vmatprep.subr.bf16.mxu0 0
    %1346 = vmatpush1.bf16.msra.mxu0 0
    %1347 = vmatprep.subr.bf16.mxu0 0
    %1348 = vmatpush1.bf16.msra.mxu0 %v190
    %1349 = vmatprep.subr.bf16.mxu0 0
    %1350 = vmatpush1.bf16.msra.mxu0 %v189
    %1351 = vmatprep.subr.bf16.mxu0 0
    %1352 = vmatpush2.bf16.msra.mxu0 0
    %1353 = vmatprep.subr.bf16.mxu0 0
    %1354 = vmatpush2.bf16.msra.mxu0 0
    %1355 = vmatprep.subr.bf16.mxu0 0
    %1356 = vmatpush2.bf16.msra.mxu0 0
    %1357 = vmatprep.subr.bf16.mxu0 0
    %1358 = vmatpush2.bf16.msra.mxu0 0
    %1359 = vmatprep.subr.bf16.mxu0 0
    %1360 = vmatpush2.bf16.msra.mxu0 0
    %1361 = vmatprep.subr.bf16.mxu0 0
    %1362 = vmatpush2.bf16.msra.mxu0 0
    %1363 = vmatprep.subr.bf16.mxu0 0
    %1364 = vmatpush2.bf16.msra.mxu0 0
    %1365 = vmatprep.subr.bf16.mxu0 0
    %1366 = vmatpush2.bf16.msra.mxu0 0
    %1367 = vmatprep.mubr.bf16.mxu0 0
    %1368 = vmatmul.mubr.bf16.gmra.mxu0 %v1333
    %v1369 = vpop.f32.mrf.mxu0
    %v1370 = vadd.f32 %v1327, %v1369
    %v1371 = vpop.f32.mrf.mxu0
    %v1372 = vpop.f32.mrf.mxu0
    %v1373 = vpop.f32.mrf.mxu0
    %1374 = vdwg.mxu0
    %v1375 = vadd.f32 %v1370, %v241
    %vm1376 = vcmp.gt.f32.partialorder %v1375, 0.0
    %v1377 = vmin.f32 %v1375, 0.0
    %v1378 = vmul.f32 %v1377, 1.442695
    %v1379 = vpow.pop %v1378
    %v1380 = vsub.f32 %v1379, 1.0
    %v1381 = vsel %vm1376, %v1375, %v1380
    %v1382 = vpack.c.bf16 %v1381, %v1381
    %v1384 = vsel %vm193, %v1382, 0
    %1386 = vmatprep.subr.bf16.mxu0 0
    %1387 = vmatpush1.bf16.msra.mxu0 0
    %1388 = vmatprep.subr.bf16.mxu0 0
    %1389 = vmatpush1.bf16.msra.mxu0 0
    %1390 = vmatprep.subr.bf16.mxu0 0
    %1391 = vmatpush1.bf16.msra.mxu0 0
    %1392 = vmatprep.subr.bf16.mxu0 0
    %1393 = vmatpush1.bf16.msra.mxu0 0
    %1394 = vmatprep.subr.bf16.mxu0 0
    %1395 = vmatpush1.bf16.msra.mxu0 0
    %1396 = vmatprep.subr.bf16.mxu0 0
    %1397 = vmatpush1.bf16.msra.mxu0 0
    %1398 = vmatprep.subr.bf16.mxu0 0
    %1399 = vmatpush1.bf16.msra.mxu0 %v266
    %1400 = vmatprep.subr.bf16.mxu0 0
    %1401 = vmatpush1.bf16.msra.mxu0 %v265
    %1402 = vmatprep.subr.bf16.mxu0 0
    %1403 = vmatpush2.bf16.msra.mxu0 0
    %1404 = vmatprep.subr.bf16.mxu0 0
    %1405 = vmatpush2.bf16.msra.mxu0 0
    %1406 = vmatprep.subr.bf16.mxu0 0
    %1407 = vmatpush2.bf16.msra.mxu0 0
    %1408 = vmatprep.subr.bf16.mxu0 0
    %1409 = vmatpush2.bf16.msra.mxu0 0
    %1410 = vmatprep.subr.bf16.mxu0 0
    %1411 = vmatpush2.bf16.msra.mxu0 0
    %1412 = vmatprep.subr.bf16.mxu0 0
    %1413 = vmatpush2.bf16.msra.mxu0 0
    %1414 = vmatprep.subr.bf16.mxu0 0
    %1415 = vmatpush2.bf16.msra.mxu0 0
    %1416 = vmatprep.subr.bf16.mxu0 0
    %1417 = vmatpush2.bf16.msra.mxu0 0
    %1418 = vmatprep.mubr.bf16.mxu0 0
    %1419 = vmatmul.mubr.bf16.gmra.mxu0 %v1384
    %v1420 = vpop.f32.mrf.mxu0
    %v1421 = vadd.f32 %v255, %v1420
    %v1422 = vpop.f32.mrf.mxu0
    %v1423 = vpop.f32.mrf.mxu0
    %v1424 = vpop.f32.mrf.mxu0
    %1425 = vdwg.mxu0
    %v1426 = vpack.c.bf16 %v1282, %v1282
    %1428 = vrot.lane.b32.xlu0 %v1426, 64
    %v1429 = vpop.permute.xlu0 %1428
    %v1431 = vsel %vm193, %v1429, 0
    %1433 = vmatprep.subr.bf16.mxu0 0
    %1434 = vmatpush1.bf16.msra.mxu0 0
    %1435 = vmatprep.subr.bf16.mxu0 0
    %1436 = vmatpush1.bf16.msra.mxu0 0
    %1437 = vmatprep.subr.bf16.mxu0 0
    %1438 = vmatpush1.bf16.msra.mxu0 0
    %1439 = vmatprep.subr.bf16.mxu0 0
    %1440 = vmatpush1.bf16.msra.mxu0 0
    %1441 = vmatprep.subr.bf16.mxu0 0
    %1442 = vmatpush1.bf16.msra.mxu0 0
    %1443 = vmatprep.subr.bf16.mxu0 0
    %1444 = vmatpush1.bf16.msra.mxu0 0
    %1445 = vmatprep.subr.bf16.mxu0 0
    %1446 = vmatpush1.bf16.msra.mxu0 %v328
    %1447 = vmatprep.subr.bf16.mxu0 0
    %1448 = vmatpush1.bf16.msra.mxu0 %v327
    %1449 = vmatprep.subr.bf16.mxu0 0
    %1450 = vmatpush2.bf16.msra.mxu0 0
    %1451 = vmatprep.subr.bf16.mxu0 0
    %1452 = vmatpush2.bf16.msra.mxu0 0
    %1453 = vmatprep.subr.bf16.mxu0 0
    %1454 = vmatpush2.bf16.msra.mxu0 0
    %1455 = vmatprep.subr.bf16.mxu0 0
    %1456 = vmatpush2.bf16.msra.mxu0 0
    %1457 = vmatprep.subr.bf16.mxu0 0
    %1458 = vmatpush2.bf16.msra.mxu0 0
    %1459 = vmatprep.subr.bf16.mxu0 0
    %1460 = vmatpush2.bf16.msra.mxu0 0
    %1461 = vmatprep.subr.bf16.mxu0 0
    %1462 = vmatpush2.bf16.msra.mxu0 0
    %1463 = vmatprep.subr.bf16.mxu0 0
    %1464 = vmatpush2.bf16.msra.mxu0 0
    %1465 = vmatprep.mubr.bf16.mxu0 0
    %1466 = vmatmul.mubr.bf16.gmra.mxu0 %v1431
    %v1467 = vpop.f32.mrf.mxu0
    %v1468 = vadd.f32 %v317, %v1467
    %v1469 = vpop.f32.mrf.mxu0
    %v1470 = vpop.f32.mrf.mxu0
    %v1471 = vpop.f32.mrf.mxu0
    %1472 = vdwg.mxu0
    %v1473 = vadd.f32 %v1421, %v1468
    %v1474 = vxor.u32 %v1473, 2147483648
    %v1475 = vmul.f32 %v1474, 1.442695
    %v1476 = vpow.pop %v1475
    %v1477 = vadd.f32 %v1476, 1.0
    %v1478 = vrcp.pop %v1477
    %v1479 = vmul.f32 1.0, %v1478
    %1481 = vrot.lane.b32.xlu0 %v1468, 64
    %v1482 = vpop.permute.xlu0 %1481
    %v1484 = vmul.f32 %v1479, %v1482
    %1486 = vrot.lane.b32.xlu0 %v1484, 64
    %v1487 = vpop.permute.xlu0 %1486
    %v1489 = vadd.f32 %v1421, %v1487
    %v1490 = vtanh.pop %v1489
    %v1491 = vsub.f32 %v1282, %v1490
    %1493 = vrot.lane.b32.xlu0 %v1491, 96
    %v1494 = vpop.permute.xlu0 %1493
    %v1496 = vmul.f32 %v1479, %v1494
    %1498 = vrot.lane.b32.xlu0 %v1496, 32
    %v1499 = vpop.permute.xlu0 %1498
    %v1501 = vadd.f32 %v1490, %v1499
    %s1502 = scalar_lea.vmem [#allocation3], 12
    %v1503 = vld [vmem:[%s1502] sm:$0x3]
    %s1504 = scalar_lea.vmem [#allocation6], 12
    %v1505 = vld [vmem:[%s1504] sm:$0x3]
    %v1506 = vpack.c.bf16 %v1503, %v1503
    %v1507 = vpack.c.bf16 %v1505, %v1505
    %v1509 = vsel %vm133, %v1507, 0
    %1511 = vmatprep.subr.bf16.mxu0 0
    %1512 = vmatpush1.bf16.msra.mxu0 0
    %1513 = vmatprep.subr.bf16.mxu0 0
    %1514 = vmatpush1.bf16.msra.mxu0 0
    %1515 = vmatprep.subr.bf16.mxu0 0
    %1516 = vmatpush1.bf16.msra.mxu0 0
    %1517 = vmatprep.subr.bf16.mxu0 0
    %1518 = vmatpush1.bf16.msra.mxu0 0
    %1519 = vmatprep.subr.bf16.mxu0 0
    %1520 = vmatpush1.bf16.msra.mxu0 0
    %1521 = vmatprep.subr.bf16.mxu0 0
    %1522 = vmatpush1.bf16.msra.mxu0 0
    %1523 = vmatprep.subr.bf16.mxu0 0
    %1524 = vmatpush1.bf16.msra.mxu0 0
    %1525 = vmatprep.subr.bf16.mxu0 0
    %1526 = vmatpush1.bf16.msra.mxu0 %v139
    %1527 = vmatprep.subr.bf16.mxu0 0
    %1528 = vmatpush2.bf16.msra.mxu0 0
    %1529 = vmatprep.subr.bf16.mxu0 0
    %1530 = vmatpush2.bf16.msra.mxu0 0
    %1531 = vmatprep.subr.bf16.mxu0 0
    %1532 = vmatpush2.bf16.msra.mxu0 0
    %1533 = vmatprep.subr.bf16.mxu0 0
    %1534 = vmatpush2.bf16.msra.mxu0 0
    %1535 = vmatprep.subr.bf16.mxu0 0
    %1536 = vmatpush2.bf16.msra.mxu0 0
    %1537 = vmatprep.subr.bf16.mxu0 0
    %1538 = vmatpush2.bf16.msra.mxu0 0
    %1539 = vmatprep.subr.bf16.mxu0 0
    %1540 = vmatpush2.bf16.msra.mxu0 0
    %1541 = vmatprep.subr.bf16.mxu0 0
    %1542 = vmatpush2.bf16.msra.mxu0 0
    %1543 = vmatprep.mubr.bf16.mxu0 0
    %1544 = vmatmul.mubr.bf16.gmra.mxu0 %v1509
    %v1545 = vpop.f32.mrf.mxu0
    %v1546 = vadd.f32 0.0, %v1545
    %v1547 = vpop.f32.mrf.mxu0
    %v1548 = vpop.f32.mrf.mxu0
    %v1549 = vpop.f32.mrf.mxu0
    %1550 = vdwg.mxu0
    %v1552 = vsel %vm193, %v1506, 0
    %1554 = vmatprep.subr.bf16.mxu0 0
    %1555 = vmatpush1.bf16.msra.mxu0 0
    %1556 = vmatprep.subr.bf16.mxu0 0
    %1557 = vmatpush1.bf16.msra.mxu0 0
    %1558 = vmatprep.subr.bf16.mxu0 0
    %1559 = vmatpush1.bf16.msra.mxu0 0
    %1560 = vmatprep.subr.bf16.mxu0 0
    %1561 = vmatpush1.bf16.msra.mxu0 0
    %1562 = vmatprep.subr.bf16.mxu0 0
    %1563 = vmatpush1.bf16.msra.mxu0 0
    %1564 = vmatprep.subr.bf16.mxu0 0
    %1565 = vmatpush1.bf16.msra.mxu0 0
    %1566 = vmatprep.subr.bf16.mxu0 0
    %1567 = vmatpush1.bf16.msra.mxu0 %v190
    %1568 = vmatprep.subr.bf16.mxu0 0
    %1569 = vmatpush1.bf16.msra.mxu0 %v189
    %1570 = vmatprep.subr.bf16.mxu0 0
    %1571 = vmatpush2.bf16.msra.mxu0 0
    %1572 = vmatprep.subr.bf16.mxu0 0
    %1573 = vmatpush2.bf16.msra.mxu0 0
    %1574 = vmatprep.subr.bf16.mxu0 0
    %1575 = vmatpush2.bf16.msra.mxu0 0
    %1576 = vmatprep.subr.bf16.mxu0 0
    %1577 = vmatpush2.bf16.msra.mxu0 0
    %1578 = vmatprep.subr.bf16.mxu0 0
    %1579 = vmatpush2.bf16.msra.mxu0 0
    %1580 = vmatprep.subr.bf16.mxu0 0
    %1581 = vmatpush2.bf16.msra.mxu0 0
    %1582 = vmatprep.subr.bf16.mxu0 0
    %1583 = vmatpush2.bf16.msra.mxu0 0
    %1584 = vmatprep.subr.bf16.mxu0 0
    %1585 = vmatpush2.bf16.msra.mxu0 0
    %1586 = vmatprep.mubr.bf16.mxu0 0
    %1587 = vmatmul.mubr.bf16.gmra.mxu0 %v1552
    %v1588 = vpop.f32.mrf.mxu0
    %v1589 = vadd.f32 %v1546, %v1588
    %v1590 = vpop.f32.mrf.mxu0
    %v1591 = vpop.f32.mrf.mxu0
    %v1592 = vpop.f32.mrf.mxu0
    %1593 = vdwg.mxu0
    %v1594 = vadd.f32 %v1589, %v241
    %vm1595 = vcmp.gt.f32.partialorder %v1594, 0.0
    %v1596 = vmin.f32 %v1594, 0.0
    %v1597 = vmul.f32 %v1596, 1.442695
    %v1598 = vpow.pop %v1597
    %v1599 = vsub.f32 %v1598, 1.0
    %v1600 = vsel %vm1595, %v1594, %v1599
    %v1601 = vpack.c.bf16 %v1600, %v1600
    %v1603 = vsel %vm193, %v1601, 0
    %1605 = vmatprep.subr.bf16.mxu0 0
    %1606 = vmatpush1.bf16.msra.mxu0 0
    %1607 = vmatprep.subr.bf16.mxu0 0
    %1608 = vmatpush1.bf16.msra.mxu0 0
    %1609 = vmatprep.subr.bf16.mxu0 0
    %1610 = vmatpush1.bf16.msra.mxu0 0
    %1611 = vmatprep.subr.bf16.mxu0 0
    %1612 = vmatpush1.bf16.msra.mxu0 0
    %1613 = vmatprep.subr.bf16.mxu0 0
    %1614 = vmatpush1.bf16.msra.mxu0 0
    %1615 = vmatprep.subr.bf16.mxu0 0
    %1616 = vmatpush1.bf16.msra.mxu0 0
    %1617 = vmatprep.subr.bf16.mxu0 0
    %1618 = vmatpush1.bf16.msra.mxu0 %v266
    %1619 = vmatprep.subr.bf16.mxu0 0
    %1620 = vmatpush1.bf16.msra.mxu0 %v265
    %1621 = vmatprep.subr.bf16.mxu0 0
    %1622 = vmatpush2.bf16.msra.mxu0 0
    %1623 = vmatprep.subr.bf16.mxu0 0
    %1624 = vmatpush2.bf16.msra.mxu0 0
    %1625 = vmatprep.subr.bf16.mxu0 0
    %1626 = vmatpush2.bf16.msra.mxu0 0
    %1627 = vmatprep.subr.bf16.mxu0 0
    %1628 = vmatpush2.bf16.msra.mxu0 0
    %1629 = vmatprep.subr.bf16.mxu0 0
    %1630 = vmatpush2.bf16.msra.mxu0 0
    %1631 = vmatprep.subr.bf16.mxu0 0
    %1632 = vmatpush2.bf16.msra.mxu0 0
    %1633 = vmatprep.subr.bf16.mxu0 0
    %1634 = vmatpush2.bf16.msra.mxu0 0
    %1635 = vmatprep.subr.bf16.mxu0 0
    %1636 = vmatpush2.bf16.msra.mxu0 0
    %1637 = vmatprep.mubr.bf16.mxu0 0
    %1638 = vmatmul.mubr.bf16.gmra.mxu0 %v1603
    %v1639 = vpop.f32.mrf.mxu0
    %v1640 = vadd.f32 %v255, %v1639
    %v1641 = vpop.f32.mrf.mxu0
    %v1642 = vpop.f32.mrf.mxu0
    %v1643 = vpop.f32.mrf.mxu0
    %1644 = vdwg.mxu0
    %v1645 = vpack.c.bf16 %v1501, %v1501
    %1647 = vrot.lane.b32.xlu0 %v1645, 64
    %v1648 = vpop.permute.xlu0 %1647
    %v1650 = vsel %vm193, %v1648, 0
    %1652 = vmatprep.subr.bf16.mxu0 0
    %1653 = vmatpush1.bf16.msra.mxu0 0
    %1654 = vmatprep.subr.bf16.mxu0 0
    %1655 = vmatpush1.bf16.msra.mxu0 0
    %1656 = vmatprep.subr.bf16.mxu0 0
    %1657 = vmatpush1.bf16.msra.mxu0 0
    %1658 = vmatprep.subr.bf16.mxu0 0
    %1659 = vmatpush1.bf16.msra.mxu0 0
    %1660 = vmatprep.subr.bf16.mxu0 0
    %1661 = vmatpush1.bf16.msra.mxu0 0
    %1662 = vmatprep.subr.bf16.mxu0 0
    %1663 = vmatpush1.bf16.msra.mxu0 0
    %1664 = vmatprep.subr.bf16.mxu0 0
    %1665 = vmatpush1.bf16.msra.mxu0 %v328
    %1666 = vmatprep.subr.bf16.mxu0 0
    %1667 = vmatpush1.bf16.msra.mxu0 %v327
    %1668 = vmatprep.subr.bf16.mxu0 0
    %1669 = vmatpush2.bf16.msra.mxu0 0
    %1670 = vmatprep.subr.bf16.mxu0 0
    %1671 = vmatpush2.bf16.msra.mxu0 0
    %1672 = vmatprep.subr.bf16.mxu0 0
    %1673 = vmatpush2.bf16.msra.mxu0 0
    %1674 = vmatprep.subr.bf16.mxu0 0
    %1675 = vmatpush2.bf16.msra.mxu0 0
    %1676 = vmatprep.subr.bf16.mxu0 0
    %1677 = vmatpush2.bf16.msra.mxu0 0
    %1678 = vmatprep.subr.bf16.mxu0 0
    %1679 = vmatpush2.bf16.msra.mxu0 0
    %1680 = vmatprep.subr.bf16.mxu0 0
    %1681 = vmatpush2.bf16.msra.mxu0 0
    %1682 = vmatprep.subr.bf16.mxu0 0
    %1683 = vmatpush2.bf16.msra.mxu0 0
    %1684 = vmatprep.mubr.bf16.mxu0 0
    %1685 = vmatmul.mubr.bf16.gmra.mxu0 %v1650
    %v1686 = vpop.f32.mrf.mxu0
    %v1687 = vadd.f32 %v317, %v1686
    %v1688 = vpop.f32.mrf.mxu0
    %v1689 = vpop.f32.mrf.mxu0
    %v1690 = vpop.f32.mrf.mxu0
    %1691 = vdwg.mxu0
    %v1692 = vadd.f32 %v1640, %v1687
    %v1693 = vxor.u32 %v1692, 2147483648
    %v1694 = vmul.f32 %v1693, 1.442695
    %v1695 = vpow.pop %v1694
    %v1696 = vadd.f32 %v1695, 1.0
    %v1697 = vrcp.pop %v1696
    %v1698 = vmul.f32 1.0, %v1697
    %1700 = vrot.lane.b32.xlu0 %v1687, 64
    %v1701 = vpop.permute.xlu0 %1700
    %v1703 = vmul.f32 %v1698, %v1701
    %1705 = vrot.lane.b32.xlu0 %v1703, 64
    %v1706 = vpop.permute.xlu0 %1705
    %v1708 = vadd.f32 %v1640, %v1706
    %v1709 = vtanh.pop %v1708
    %v1710 = vsub.f32 %v1501, %v1709
    %1712 = vrot.lane.b32.xlu0 %v1710, 96
    %v1713 = vpop.permute.xlu0 %1712
    %v1715 = vmul.f32 %v1698, %v1713
    %1717 = vrot.lane.b32.xlu0 %v1715, 32
    %v1718 = vpop.permute.xlu0 %1717
    %v1720 = vadd.f32 %v1709, %v1718
    %s1721 = scalar_lea.vmem [#allocation3], 14
    %v1722 = vld [vmem:[%s1721] sm:$0x3]
    %s1723 = scalar_lea.vmem [#allocation6], 14
    %v1724 = vld [vmem:[%s1723] sm:$0x3]
    %v1725 = vpack.c.bf16 %v1722, %v1722
    %v1726 = vpack.c.bf16 %v1724, %v1724
    %v1728 = vsel %vm133, %v1726, 0
    %1730 = vmatprep.subr.bf16.mxu0 0
    %1731 = vmatpush1.bf16.msra.mxu0 0
    %1732 = vmatprep.subr.bf16.mxu0 0
    %1733 = vmatpush1.bf16.msra.mxu0 0
    %1734 = vmatprep.subr.bf16.mxu0 0
    %1735 = vmatpush1.bf16.msra.mxu0 0
    %1736 = vmatprep.subr.bf16.mxu0 0
    %1737 = vmatpush1.bf16.msra.mxu0 0
    %1738 = vmatprep.subr.bf16.mxu0 0
    %1739 = vmatpush1.bf16.msra.mxu0 0
    %1740 = vmatprep.subr.bf16.mxu0 0
    %1741 = vmatpush1.bf16.msra.mxu0 0
    %1742 = vmatprep.subr.bf16.mxu0 0
    %1743 = vmatpush1.bf16.msra.mxu0 0
    %1744 = vmatprep.subr.bf16.mxu0 0
    %1745 = vmatpush1.bf16.msra.mxu0 %v139
    %1746 = vmatprep.subr.bf16.mxu0 0
    %1747 = vmatpush2.bf16.msra.mxu0 0
    %1748 = vmatprep.subr.bf16.mxu0 0
    %1749 = vmatpush2.bf16.msra.mxu0 0
    %1750 = vmatprep.subr.bf16.mxu0 0
    %1751 = vmatpush2.bf16.msra.mxu0 0
    %1752 = vmatprep.subr.bf16.mxu0 0
    %1753 = vmatpush2.bf16.msra.mxu0 0
    %1754 = vmatprep.subr.bf16.mxu0 0
    %1755 = vmatpush2.bf16.msra.mxu0 0
    %1756 = vmatprep.subr.bf16.mxu0 0
    %1757 = vmatpush2.bf16.msra.mxu0 0
    %1758 = vmatprep.subr.bf16.mxu0 0
    %1759 = vmatpush2.bf16.msra.mxu0 0
    %1760 = vmatprep.subr.bf16.mxu0 0
    %1761 = vmatpush2.bf16.msra.mxu0 0
    %1762 = vmatprep.mubr.bf16.mxu0 0
    %1763 = vmatmul.mubr.bf16.gmra.mxu0 %v1728
    %v1764 = vpop.f32.mrf.mxu0
    %v1765 = vadd.f32 0.0, %v1764
    %v1766 = vpop.f32.mrf.mxu0
    %v1767 = vpop.f32.mrf.mxu0
    %v1768 = vpop.f32.mrf.mxu0
    %1769 = vdwg.mxu0
    %v1771 = vsel %vm193, %v1725, 0
    %1773 = vmatprep.subr.bf16.mxu0 0
    %1774 = vmatpush1.bf16.msra.mxu0 0
    %1775 = vmatprep.subr.bf16.mxu0 0
    %1776 = vmatpush1.bf16.msra.mxu0 0
    %1777 = vmatprep.subr.bf16.mxu0 0
    %1778 = vmatpush1.bf16.msra.mxu0 0
    %1779 = vmatprep.subr.bf16.mxu0 0
    %1780 = vmatpush1.bf16.msra.mxu0 0
    %1781 = vmatprep.subr.bf16.mxu0 0
    %1782 = vmatpush1.bf16.msra.mxu0 0
    %1783 = vmatprep.subr.bf16.mxu0 0
    %1784 = vmatpush1.bf16.msra.mxu0 0
    %1785 = vmatprep.subr.bf16.mxu0 0
    %1786 = vmatpush1.bf16.msra.mxu0 %v190
    %1787 = vmatprep.subr.bf16.mxu0 0
    %1788 = vmatpush1.bf16.msra.mxu0 %v189
    %1789 = vmatprep.subr.bf16.mxu0 0
    %1790 = vmatpush2.bf16.msra.mxu0 0
    %1791 = vmatprep.subr.bf16.mxu0 0
    %1792 = vmatpush2.bf16.msra.mxu0 0
    %1793 = vmatprep.subr.bf16.mxu0 0
    %1794 = vmatpush2.bf16.msra.mxu0 0
    %1795 = vmatprep.subr.bf16.mxu0 0
    %1796 = vmatpush2.bf16.msra.mxu0 0
    %1797 = vmatprep.subr.bf16.mxu0 0
    %1798 = vmatpush2.bf16.msra.mxu0 0
    %1799 = vmatprep.subr.bf16.mxu0 0
    %1800 = vmatpush2.bf16.msra.mxu0 0
    %1801 = vmatprep.subr.bf16.mxu0 0
    %1802 = vmatpush2.bf16.msra.mxu0 0
    %1803 = vmatprep.subr.bf16.mxu0 0
    %1804 = vmatpush2.bf16.msra.mxu0 0
    %1805 = vmatprep.mubr.bf16.mxu0 0
    %1806 = vmatmul.mubr.bf16.gmra.mxu0 %v1771
    %v1807 = vpop.f32.mrf.mxu0
    %v1808 = vadd.f32 %v1765, %v1807
    %v1809 = vpop.f32.mrf.mxu0
    %v1810 = vpop.f32.mrf.mxu0
    %v1811 = vpop.f32.mrf.mxu0
    %1812 = vdwg.mxu0
    %v1813 = vadd.f32 %v1808, %v241
    %vm1814 = vcmp.gt.f32.partialorder %v1813, 0.0
    %v1815 = vmin.f32 %v1813, 0.0
    %v1816 = vmul.f32 %v1815, 1.442695
    %v1817 = vpow.pop %v1816
    %v1818 = vsub.f32 %v1817, 1.0
    %v1819 = vsel %vm1814, %v1813, %v1818
    %v1820 = vpack.c.bf16 %v1819, %v1819
    %v1822 = vsel %vm193, %v1820, 0
    %1824 = vmatprep.subr.bf16.mxu0 0
    %1825 = vmatpush1.bf16.msra.mxu0 0
    %1826 = vmatprep.subr.bf16.mxu0 0
    %1827 = vmatpush1.bf16.msra.mxu0 0
    %1828 = vmatprep.subr.bf16.mxu0 0
    %1829 = vmatpush1.bf16.msra.mxu0 0
    %1830 = vmatprep.subr.bf16.mxu0 0
    %1831 = vmatpush1.bf16.msra.mxu0 0
    %1832 = vmatprep.subr.bf16.mxu0 0
    %1833 = vmatpush1.bf16.msra.mxu0 0
    %1834 = vmatprep.subr.bf16.mxu0 0
    %1835 = vmatpush1.bf16.msra.mxu0 0
    %1836 = vmatprep.subr.bf16.mxu0 0
    %1837 = vmatpush1.bf16.msra.mxu0 %v266
    %1838 = vmatprep.subr.bf16.mxu0 0
    %1839 = vmatpush1.bf16.msra.mxu0 %v265
    %1840 = vmatprep.subr.bf16.mxu0 0
    %1841 = vmatpush2.bf16.msra.mxu0 0
    %1842 = vmatprep.subr.bf16.mxu0 0
    %1843 = vmatpush2.bf16.msra.mxu0 0
    %1844 = vmatprep.subr.bf16.mxu0 0
    %1845 = vmatpush2.bf16.msra.mxu0 0
    %1846 = vmatprep.subr.bf16.mxu0 0
    %1847 = vmatpush2.bf16.msra.mxu0 0
    %1848 = vmatprep.subr.bf16.mxu0 0
    %1849 = vmatpush2.bf16.msra.mxu0 0
    %1850 = vmatprep.subr.bf16.mxu0 0
    %1851 = vmatpush2.bf16.msra.mxu0 0
    %1852 = vmatprep.subr.bf16.mxu0 0
    %1853 = vmatpush2.bf16.msra.mxu0 0
    %1854 = vmatprep.subr.bf16.mxu0 0
    %1855 = vmatpush2.bf16.msra.mxu0 0
    %1856 = vmatprep.mubr.bf16.mxu0 0
    %1857 = vmatmul.mubr.bf16.gmra.mxu0 %v1822
    %v1858 = vpop.f32.mrf.mxu0
    %v1859 = vadd.f32 %v255, %v1858
    %v1860 = vpop.f32.mrf.mxu0
    %v1861 = vpop.f32.mrf.mxu0
    %v1862 = vpop.f32.mrf.mxu0
    %1863 = vdwg.mxu0
    %v1864 = vpack.c.bf16 %v1720, %v1720
    %1866 = vrot.lane.b32.xlu0 %v1864, 64
    %v1867 = vpop.permute.xlu0 %1866
    %v1869 = vsel %vm193, %v1867, 0
    %1871 = vmatprep.subr.bf16.mxu0 0
    %1872 = vmatpush1.bf16.msra.mxu0 0
    %1873 = vmatprep.subr.bf16.mxu0 0
    %1874 = vmatpush1.bf16.msra.mxu0 0
    %1875 = vmatprep.subr.bf16.mxu0 0
    %1876 = vmatpush1.bf16.msra.mxu0 0
    %1877 = vmatprep.subr.bf16.mxu0 0
    %1878 = vmatpush1.bf16.msra.mxu0 0
    %1879 = vmatprep.subr.bf16.mxu0 0
    %1880 = vmatpush1.bf16.msra.mxu0 0
    %1881 = vmatprep.subr.bf16.mxu0 0
    %1882 = vmatpush1.bf16.msra.mxu0 0
    %1883 = vmatprep.subr.bf16.mxu0 0
    %1884 = vmatpush1.bf16.msra.mxu0 %v328
    %1885 = vmatprep.subr.bf16.mxu0 0
    %1886 = vmatpush1.bf16.msra.mxu0 %v327
    %1887 = vmatprep.subr.bf16.mxu0 0
    %1888 = vmatpush2.bf16.msra.mxu0 0
    %1889 = vmatprep.subr.bf16.mxu0 0
    %1890 = vmatpush2.bf16.msra.mxu0 0
    %1891 = vmatprep.subr.bf16.mxu0 0
    %1892 = vmatpush2.bf16.msra.mxu0 0
    %1893 = vmatprep.subr.bf16.mxu0 0
    %1894 = vmatpush2.bf16.msra.mxu0 0
    %1895 = vmatprep.subr.bf16.mxu0 0
    %1896 = vmatpush2.bf16.msra.mxu0 0
    %1897 = vmatprep.subr.bf16.mxu0 0
    %1898 = vmatpush2.bf16.msra.mxu0 0
    %1899 = vmatprep.subr.bf16.mxu0 0
    %1900 = vmatpush2.bf16.msra.mxu0 0
    %1901 = vmatprep.subr.bf16.mxu0 0
    %1902 = vmatpush2.bf16.msra.mxu0 0
    %1903 = vmatprep.mubr.bf16.mxu0 0
    %1904 = vmatmul.mubr.bf16.gmra.mxu0 %v1869
    %v1905 = vpop.f32.mrf.mxu0
    %v1906 = vadd.f32 %v317, %v1905
    %v1907 = vpop.f32.mrf.mxu0
    %v1908 = vpop.f32.mrf.mxu0
    %v1909 = vpop.f32.mrf.mxu0
    %1910 = vdwg.mxu0
    %v1911 = vadd.f32 %v1859, %v1906
    %v1912 = vxor.u32 %v1911, 2147483648
    %v1913 = vmul.f32 %v1912, 1.442695
    %v1914 = vpow.pop %v1913
    %v1915 = vadd.f32 %v1914, 1.0
    %v1916 = vrcp.pop %v1915
    %v1917 = vmul.f32 1.0, %v1916
    %1919 = vrot.lane.b32.xlu0 %v1906, 64
    %v1920 = vpop.permute.xlu0 %1919
    %v1922 = vmul.f32 %v1917, %v1920
    %1924 = vrot.lane.b32.xlu0 %v1922, 64
    %v1925 = vpop.permute.xlu0 %1924
    %v1927 = vadd.f32 %v1859, %v1925
    %v1928 = vtanh.pop %v1927
    %v1929 = vsub.f32 %v1720, %v1928
    %1931 = vrot.lane.b32.xlu0 %v1929, 96
    %v1932 = vpop.permute.xlu0 %1931
    %v1934 = vmul.f32 %v1917, %v1932
    %1936 = vrot.lane.b32.xlu0 %v1934, 32
    %v1937 = vpop.permute.xlu0 %1936
    %v1939 = vadd.f32 %v1928, %v1937
    %1941 = vrot.lane.b32.xlu0 %v1939, 64
    %v1942 = vpop.permute.xlu0 %1941
    %vm1944 = vcmask 254976
    %1945 = vst.msk [vmem:[#allocation2] sm:$0x3] %vm1944, %v1942
    // Predicated region
    $region66: #{tpu_custom_call.1} parent=1 // pred_check
      %p1946 = pneg %p105
    $region67: #{tpu_custom_call.1} parent=1 // pred_check_branch
      %1948 = sbr.rel (%p1946) target = $region69
    $region68: #{tpu_custom_call.1} parent=1 // pred_region
      %1949 = vst.msk [vmem:[#allocation12] sm:$0x3] %vm1944, %v1942
    $region69: #{tpu_custom_call.1} parent=1 // pred_fallthru
      _
    // Predicated region
    $region70: #{tpu_custom_call.1} parent=1 // pred_check
      _
    $region71: #{tpu_custom_call.1} parent=1 // pred_check_branch
      %1951 = sbr.rel (0) target = $region73
    $region72: #{tpu_custom_call.1} parent=1 // pred_region
      %s1953 = ssub.s32 32, 32
      %1954 = vsyncadd [#allocation5], %s1953
      %s1956 = sshll.u32 [#allocation12], 4
      %s1957 = int_to_ptr.vmem [resolvable:$true] %s1956
      %1959 = dma.vmem_to_hbm [thread:$0]  %s1957, 32, %s10, [#allocation5]
    $region73: #{tpu_custom_call.1} parent=1 // pred_fallthru
      _
    // Predicated region
    $region74: #{tpu_custom_call.1} parent=1 // pred_check
      _
    $region75: #{tpu_custom_call.1} parent=1 // pred_check_branch
      %1961 = sbr.rel (0) target = $region77
    $region76: #{tpu_custom_call.1} parent=1 // pred_region
      %1962 = dma.done [#allocation5], 32
    $region77: #{tpu_custom_call.1} parent=1 // pred_fallthru
      _
    %1963 = vsyncpa [#allocation4], 1
    %1964 = vsyncpa [#allocation7], 1
    %1965 = vsyncpa [#allocation10], 1
    %1966 = vsyncpa [#allocation5], 1

</llo_original>
